<compile_context>
chip_gen: v7x
topology: tpu7x:2x2x1
jax: 0.10.0
libtpu: 0.0.40
codegen_flags: <defaults>
</compile_context>

<pallas_src>
import functools

import jax
import jax.numpy as jnp
import numpy as np
from jax.experimental import pallas as pl
from jax.experimental.pallas import tpu as pltpu

# ----------------------------- configuration ------------------------------
INPUT_SIZE = 16
OUTPUT_SIZE = 16
HIDDEN_SIZE = 32
NUM_LAYERS = 2
BIDIRECTIONAL = False          # fc input = hidden_size (not 2*hidden_size)
BATCH = 2
SEQ_LEN = 8


# ------------------------------ Pallas kernel ------------------------------
def _gru_recurrence(gi_all, whh, bhh, h_init, seq_ref, *, seq_len, batch, hidden):
    """Unrolled GRU recurrence with the input projection already hoisted.

    gi_all : (T*B, 3H) value  -- x @ Wih + bih, time-major rows (t major, b minor)
    whh    : (H, 3H)   value
    bhh    : (1, 3H)   value
    h_init : (B, H)    value
    seq_ref: (T*B, H)  VMEM scratch; per-step hidden states written at static offsets
    Returns the final hidden state (B, H).
    """
    H = hidden
    h = h_init
    for t in range(seq_len):                               # static -> fully unrolled
        gi = gi_all[t * batch:(t + 1) * batch, :]          # (B, 3H), static slice
        gh = jnp.dot(h, whh, preferred_element_type=jnp.float32) + bhh
        r = jax.nn.sigmoid(gi[:, 0:H] + gh[:, 0:H])
        z = jax.nn.sigmoid(gi[:, H:2 * H] + gh[:, H:2 * H])
        n = jnp.tanh(gi[:, 2 * H:3 * H] + r * gh[:, 2 * H:3 * H])
        h = (1.0 - z) * n + z * h
        seq_ref[pl.ds(t * batch, batch), :] = h            # tiny VMEM store
    return h


def fused_seq_model_kernel(x_ref, wih0_ref, whh0_ref, bih0_ref, bhh0_ref,
                           wih1_ref, whh1_ref, bih1_ref, bhh1_ref,
                           fcw_ref, fcb_ref, h0_ref,
                           o_ref, hfin_ref,
                           seq0_ref, seq1_ref,
                           *, seq_len, batch, hidden):
    """Fused 2-layer GRU + Linear + Tanh.

    x_ref   : (T*B, D)       time-major rows of the input sequence
    wih*    : (D_in, 3H)     input->hidden weights (pre-transposed, gate order r,z,n)
    whh*    : (H, 3H)        hidden->hidden weights (pre-transposed)
    bih*/bhh*: (1, 3H)
    fcw_ref : (H, O), fcb_ref: (1, O)
    h0_ref  : (L, B, H)      initial hidden states
    o_ref   : (T*B, O)       tanh(fc(...)) over the whole sequence
    hfin_ref: (L, B, H)      final hidden states
    seq*_ref: (T*B, H)       VMEM scratch for per-layer output sequences
    """
    H = hidden

    # ---- layer 0: hoisted input projection, then unrolled recurrence ----
    gi0 = (jnp.dot(x_ref[...], wih0_ref[...], preferred_element_type=jnp.float32)
           + bih0_ref[...])
    h0_fin = _gru_recurrence(gi0, whh0_ref[...], bhh0_ref[...], h0_ref[0],
                             seq0_ref, seq_len=seq_len, batch=batch, hidden=H)

    # ---- layer 1: hoisted input projection from layer-0 sequence in VMEM ----
    gi1 = (jnp.dot(seq0_ref[...], wih1_ref[...], preferred_element_type=jnp.float32)
           + bih1_ref[...])
    h1_fin = _gru_recurrence(gi1, whh1_ref[...], bhh1_ref[...], h0_ref[1],
                             seq1_ref, seq_len=seq_len, batch=batch, hidden=H)

    # ---- FC + Tanh: one matmul over the whole sequence, single output store ----
    o_ref[...] = jnp.tanh(
        jnp.dot(seq1_ref[...], fcw_ref[...], preferred_element_type=jnp.float32)
        + fcb_ref[...])

    hfin_ref[0] = h0_fin
    hfin_ref[1] = h1_fin


# ------------------------------ Pallas wrapper ------------------------------
def _vmem_specs(n):
    return [pl.BlockSpec(memory_space=pltpu.MemorySpace.VMEM) for _ in range(n)]


def sequence_model_pallas(params, x_flat, h0, *, seq_len, batch):
    TB = seq_len * batch
    p0, p1 = params['gru']
    kernel = functools.partial(fused_seq_model_kernel, seq_len=seq_len,
                               batch=batch, hidden=HIDDEN_SIZE)
    o_flat, h_out = pl.pallas_call(
        kernel,
        out_shape=(jax.ShapeDtypeStruct((TB, OUTPUT_SIZE), jnp.float32),
                   jax.ShapeDtypeStruct((NUM_LAYERS, batch, HIDDEN_SIZE), jnp.float32)),
        in_specs=_vmem_specs(12),
        out_specs=tuple(_vmem_specs(2)),
        scratch_shapes=[pltpu.VMEM((TB, HIDDEN_SIZE), jnp.float32),
                        pltpu.VMEM((TB, HIDDEN_SIZE), jnp.float32)],
    )(x_flat,
      p0['wih_t'], p0['whh_t'], p0['bih'], p0['bhh'],
      p1['wih_t'], p1['whh_t'], p1['bih'], p1['bhh'],
      params['fc_w_t'], params['fc_b'], h0)
    return o_flat, h_out


# ------------------------------- full forward ------------------------------
@jax.jit
def sequence_model_forward(params, x_bft, h0):
    """x_bft: (B, F, T) float32, h0: (num_layers, B, H).  Returns ((B,O,T), h)."""
    B, F, T = x_bft.shape
    # x.permute(0,2,1) -> (B,T,F); flatten to time-major rows (T*B, F) for the kernel.
    x_flat = jnp.transpose(x_bft, (2, 0, 1)).reshape(T * B, F)
    o_flat, h_out = sequence_model_pallas(params, x_flat, h0, seq_len=T, batch=B)
    o = jnp.transpose(o_flat.reshape(T, B, OUTPUT_SIZE), (1, 2, 0))   # (B, O, T)
    return o, h_out


# ------------------------- pure-JAX reference (check) ----------------------
def gru_layer_ref(seq_tbd, wih_t, whh_t, bih, bhh, h0):
    H = h0.shape[1]

    def step(h, x_t):
        gi = x_t @ wih_t + bih
        gh = h @ whh_t + bhh
        r = jax.nn.sigmoid(gi[:, :H] + gh[:, :H])
        z = jax.nn.sigmoid(gi[:, H:2 * H] + gh[:, H:2 * H])
        n = jnp.tanh(gi[:, 2 * H:] + r * gh[:, 2 * H:])
        h_new = (1.0 - z) * n + z * h
        return h_new, h_new

    h_last, seq = jax.lax.scan(step, h0, seq_tbd)
    return seq, h_last


def sequence_model_ref(params, x_bft, h0):
    seq = jnp.transpose(x_bft, (2, 0, 1))                 # (T, B, F)
    h_finals = []
    for l in range(NUM_LAYERS):
        p = params['gru'][l]
        seq, h_fin = gru_layer_ref(seq, p['wih_t'], p['whh_t'],
                                   p['bih'], p['bhh'], h0[l])
        h_finals.append(h_fin)
    o = jnp.tanh(seq @ params['fc_w_t'] + params['fc_b'])  # (T, B, O)
    return jnp.transpose(o, (1, 2, 0)), jnp.stack(h_finals, axis=0)


# ----------------------------- parameter init ------------------------------
def init_params(key):
    """Deterministic init matching PyTorch shapes (weights stored pre-transposed)."""
    params = {'gru': []}
    k_gru = 1.0 / np.sqrt(HIDDEN_SIZE)
    for l in range(NUM_LAYERS):
        d_in = INPUT_SIZE if l == 0 else HIDDEN_SIZE
        key, k1, k2, k3, k4 = jax.random.split(key, 5)
        # PyTorch stores weight_ih_l{l}: (3H, d_in); we pre-transpose -> (d_in, 3H)
        wih = jax.random.uniform(k1, (3 * HIDDEN_SIZE, d_in), jnp.float32, -k_gru, k_gru)
        whh = jax.random.uniform(k2, (3 * HIDDEN_SIZE, HIDDEN_SIZE), jnp.float32, -k_gru, k_gru)
        bih = jax.random.uniform(k3, (3 * HIDDEN_SIZE,), jnp.float32, -k_gru, k_gru)
        bhh = jax.random.uniform(k4, (3 * HIDDEN_SIZE,), jnp.float32, -k_gru, k_gru)
        params['gru'].append({
            'wih_t': wih.T,                      # (d_in, 3H)
            'whh_t': whh.T,                      # (H, 3H)
            'bih': bih.reshape(1, -1),           # (1, 3H)
            'bhh': bhh.reshape(1, -1),           # (1, 3H)
        })
    fc_in = HIDDEN_SIZE * (2 if BIDIRECTIONAL else 1)
    k_fc = 1.0 / np.sqrt(fc_in)
    key, k1, k2 = jax.random.split(key, 3)
    fc_w = jax.random.uniform(k1, (OUTPUT_SIZE, fc_in), jnp.float32, -k_fc, k_fc)
    fc_b = jax.random.uniform(k2, (OUTPUT_SIZE,), jnp.float32, -k_fc, k_fc)
    params['fc_w_t'] = fc_w.T                    # (fc_in, O)
    params['fc_b'] = fc_b.reshape(1, -1)         # (1, O)
    return params


# ---------------------------------- main -----------------------------------
if __name__ == "__main__":
    key = jax.random.PRNGKey(0)
    key, kx, kh, kp = jax.random.split(key, 4)

    params = init_params(kp)
    x = jax.random.normal(kx, (BATCH, INPUT_SIZE, SEQ_LEN), jnp.float32)   # [B, F, T]
    h0 = jax.random.normal(kh, (NUM_LAYERS, BATCH, HIDDEN_SIZE), jnp.float32)

    o, h = sequence_model_forward(params, x, h0)
    o = jax.block_until_ready(o)
    h = jax.block_until_ready(h)

    assert o.shape == (BATCH, OUTPUT_SIZE, SEQ_LEN)
    assert h.shape == (NUM_LAYERS, BATCH, HIDDEN_SIZE)

    # sanity check against a pure-JAX reference
    o_ref, h_ref = sequence_model_ref(params, x, h0)
    np.testing.assert_allclose(np.asarray(o), np.asarray(o_ref), rtol=1e-2, atol=1e-2)
    np.testing.assert_allclose(np.asarray(h), np.asarray(h_ref), rtol=1e-2, atol=1e-2)

    print("KERNEL_OK")
</pallas_src>

<mosaic_0001>
module attributes {stable_mosaic.version = 11 : i64} {
  func.func @fused_seq_model_kernel(%arg0: memref<16x16xf32, #tpu.memory_space<vmem>>, %arg1: memref<16x96xf32, #tpu.memory_space<vmem>>, %arg2: memref<32x96xf32, #tpu.memory_space<vmem>>, %arg3: memref<1x96xf32, #tpu.memory_space<vmem>>, %arg4: memref<1x96xf32, #tpu.memory_space<vmem>>, %arg5: memref<32x96xf32, #tpu.memory_space<vmem>>, %arg6: memref<32x96xf32, #tpu.memory_space<vmem>>, %arg7: memref<1x96xf32, #tpu.memory_space<vmem>>, %arg8: memref<1x96xf32, #tpu.memory_space<vmem>>, %arg9: memref<32x16xf32, #tpu.memory_space<vmem>>, %arg10: memref<1x16xf32, #tpu.memory_space<vmem>>, %arg11: memref<2x2x32xf32, #tpu.memory_space<vmem>>, %arg12: memref<16x16xf32, #tpu.memory_space<vmem>>, %arg13: memref<2x2x32xf32, #tpu.memory_space<vmem>>, %arg14: memref<16x32xf32, #tpu.memory_space<vmem>>, %arg15: memref<16x32xf32, #tpu.memory_space<vmem>>) attributes {dimension_semantics = [], scalar_prefetch = 0 : i64, scratch_operands = 2 : i64, tpu.core_type = #tpu.core_type<tc>} {
    %c0 = arith.constant 0 : index
    %c0_0 = arith.constant 0 : index
    %0 = vector.load %arg0[%c0, %c0_0] : memref<16x16xf32, #tpu.memory_space<vmem>>, vector<16x16xf32>
    %c0_1 = arith.constant 0 : index
    %c0_2 = arith.constant 0 : index
    %1 = vector.load %arg1[%c0_1, %c0_2] : memref<16x96xf32, #tpu.memory_space<vmem>>, vector<16x96xf32>
    %cst = arith.constant dense<0.000000e+00> : vector<16x96xf32>
    %2 = tpu.matmul %0, %1, %cst {dimension_numbers = #tpu.dot_dimension_numbers<[1], [0], [0], [1], [0, 0, 1, 1], [], []>} : vector<16x16xf32>, vector<16x96xf32>, vector<16x96xf32> -> vector<16x96xf32>
    %c0_3 = arith.constant 0 : index
    %c0_4 = arith.constant 0 : index
    %3 = vector.load %arg3[%c0_3, %c0_4] : memref<1x96xf32, #tpu.memory_space<vmem>>, vector<1x96xf32>
    %4 = vector.broadcast %3 : vector<1x96xf32> to vector<16x96xf32>
    %5 = arith.addf %2, %4 : vector<16x96xf32>
    %c0_5 = arith.constant 0 : index
    %c0_6 = arith.constant 0 : index
    %6 = vector.load %arg2[%c0_5, %c0_6] : memref<32x96xf32, #tpu.memory_space<vmem>>, vector<32x96xf32>
    %c0_7 = arith.constant 0 : index
    %c0_8 = arith.constant 0 : index
    %7 = vector.load %arg4[%c0_7, %c0_8] : memref<1x96xf32, #tpu.memory_space<vmem>>, vector<1x96xf32>
    %c0_9 = arith.constant 0 : index
    %c0_10 = arith.constant 0 : index
    %c0_11 = arith.constant 0 : index
    %8 = vector.load %arg11[%c0_9, %c0_10, %c0_11] : memref<2x2x32xf32, #tpu.memory_space<vmem>>, vector<1x2x32xf32>
    %9 = vector.shape_cast %8 : vector<1x2x32xf32> to vector<2x32xf32>
    %10 = vector.extract_strided_slice %5 {offsets = [0, 0], sizes = [2, 96], strides = [1, 1]} : vector<16x96xf32> to vector<2x96xf32>
    %cst_12 = arith.constant dense<0.000000e+00> : vector<2x96xf32>
    %11 = tpu.matmul %9, %6, %cst_12 {dimension_numbers = #tpu.dot_dimension_numbers<[1], [0], [0], [1], [0, 0, 1, 1], [], []>} : vector<2x32xf32>, vector<32x96xf32>, vector<2x96xf32> -> vector<2x96xf32>
    %12 = vector.broadcast %7 : vector<1x96xf32> to vector<2x96xf32>
    %13 = arith.addf %11, %12 : vector<2x96xf32>
    %14 = vector.extract_strided_slice %10 {offsets = [0, 0], sizes = [2, 32], strides = [1, 1]} : vector<2x96xf32> to vector<2x32xf32>
    %15 = vector.extract_strided_slice %13 {offsets = [0, 0], sizes = [2, 32], strides = [1, 1]} : vector<2x96xf32> to vector<2x32xf32>
    %16 = arith.addf %14, %15 : vector<2x32xf32>
    %17 = arith.negf %16 : vector<2x32xf32>
    %18 = math.exp %17 : vector<2x32xf32>
    %cst_13 = arith.constant 1.000000e+00 : f32
    %19 = vector.broadcast %cst_13 : f32 to vector<2x32xf32>
    %20 = arith.addf %19, %18 : vector<2x32xf32>
    %21 = arith.divf %19, %20 : vector<2x32xf32>
    %22 = vector.extract_strided_slice %10 {offsets = [0, 32], sizes = [2, 32], strides = [1, 1]} : vector<2x96xf32> to vector<2x32xf32>
    %23 = vector.extract_strided_slice %13 {offsets = [0, 32], sizes = [2, 32], strides = [1, 1]} : vector<2x96xf32> to vector<2x32xf32>
    %24 = arith.addf %22, %23 : vector<2x32xf32>
    %25 = arith.negf %24 : vector<2x32xf32>
    %26 = math.exp %25 : vector<2x32xf32>
    %cst_14 = arith.constant 1.000000e+00 : f32
    %27 = vector.broadcast %cst_14 : f32 to vector<2x32xf32>
    %28 = arith.addf %27, %26 : vector<2x32xf32>
    %29 = arith.divf %27, %28 : vector<2x32xf32>
    %30 = vector.extract_strided_slice %10 {offsets = [0, 64], sizes = [2, 32], strides = [1, 1]} : vector<2x96xf32> to vector<2x32xf32>
    %31 = vector.extract_strided_slice %13 {offsets = [0, 64], sizes = [2, 32], strides = [1, 1]} : vector<2x96xf32> to vector<2x32xf32>
    %32 = arith.mulf %21, %31 : vector<2x32xf32>
    %33 = arith.addf %30, %32 : vector<2x32xf32>
    %34 = math.tanh %33 : vector<2x32xf32>
    %cst_15 = arith.constant 1.000000e+00 : f32
    %35 = vector.broadcast %cst_15 : f32 to vector<2x32xf32>
    %36 = arith.subf %35, %29 : vector<2x32xf32>
    %37 = arith.mulf %36, %34 : vector<2x32xf32>
    %38 = arith.mulf %29, %9 : vector<2x32xf32>
    %39 = arith.addf %37, %38 : vector<2x32xf32>
    %c0_16 = arith.constant 0 : index
    %c0_17 = arith.constant 0 : index
    %40 = vector.load %arg14[%c0_16, %c0_17] : memref<16x32xf32, #tpu.memory_space<vmem>>, vector<2x32xf32>
    tpu.vector_store %arg14[%c0_16, %c0_17], %39 {strides = array<i32>} : memref<16x32xf32, #tpu.memory_space<vmem>>, vector<2x32xf32>,
    %41 = vector.extract_strided_slice %5 {offsets = [2, 0], sizes = [2, 96], strides = [1, 1]} : vector<16x96xf32> to vector<2x96xf32>
    %cst_18 = arith.constant dense<0.000000e+00> : vector<2x96xf32>
    %42 = tpu.matmul %39, %6, %cst_18 {dimension_numbers = #tpu.dot_dimension_numbers<[1], [0], [0], [1], [0, 0, 1, 1], [], []>} : vector<2x32xf32>, vector<32x96xf32>, vector<2x96xf32> -> vector<2x96xf32>
    %43 = vector.broadcast %7 : vector<1x96xf32> to vector<2x96xf32>
    %44 = arith.addf %42, %43 : vector<2x96xf32>
    %45 = vector.extract_strided_slice %41 {offsets = [0, 0], sizes = [2, 32], strides = [1, 1]} : vector<2x96xf32> to vector<2x32xf32>
    %46 = vector.extract_strided_slice %44 {offsets = [0, 0], sizes = [2, 32], strides = [1, 1]} : vector<2x96xf32> to vector<2x32xf32>
    %47 = arith.addf %45, %46 : vector<2x32xf32>
    %48 = arith.negf %47 : vector<2x32xf32>
    %49 = math.exp %48 : vector<2x32xf32>
    %cst_19 = arith.constant 1.000000e+00 : f32
    %50 = vector.broadcast %cst_19 : f32 to vector<2x32xf32>
    %51 = arith.addf %50, %49 : vector<2x32xf32>
    %52 = arith.divf %50, %51 : vector<2x32xf32>
    %53 = vector.extract_strided_slice %41 {offsets = [0, 32], sizes = [2, 32], strides = [1, 1]} : vector<2x96xf32> to vector<2x32xf32>
    %54 = vector.extract_strided_slice %44 {offsets = [0, 32], sizes = [2, 32], strides = [1, 1]} : vector<2x96xf32> to vector<2x32xf32>
    %55 = arith.addf %53, %54 : vector<2x32xf32>
    %56 = arith.negf %55 : vector<2x32xf32>
    %57 = math.exp %56 : vector<2x32xf32>
    %cst_20 = arith.constant 1.000000e+00 : f32
    %58 = vector.broadcast %cst_20 : f32 to vector<2x32xf32>
    %59 = arith.addf %58, %57 : vector<2x32xf32>
    %60 = arith.divf %58, %59 : vector<2x32xf32>
    %61 = vector.extract_strided_slice %41 {offsets = [0, 64], sizes = [2, 32], strides = [1, 1]} : vector<2x96xf32> to vector<2x32xf32>
    %62 = vector.extract_strided_slice %44 {offsets = [0, 64], sizes = [2, 32], strides = [1, 1]} : vector<2x96xf32> to vector<2x32xf32>
    %63 = arith.mulf %52, %62 : vector<2x32xf32>
    %64 = arith.addf %61, %63 : vector<2x32xf32>
    %65 = math.tanh %64 : vector<2x32xf32>
    %cst_21 = arith.constant 1.000000e+00 : f32
    %66 = vector.broadcast %cst_21 : f32 to vector<2x32xf32>
    %67 = arith.subf %66, %60 : vector<2x32xf32>
    %68 = arith.mulf %67, %65 : vector<2x32xf32>
    %69 = arith.mulf %60, %39 : vector<2x32xf32>
    %70 = arith.addf %68, %69 : vector<2x32xf32>
    %c2 = arith.constant 2 : index
    %c0_22 = arith.constant 0 : index
    %71 = vector.load %arg14[%c2, %c0_22] : memref<16x32xf32, #tpu.memory_space<vmem>>, vector<2x32xf32>
    tpu.vector_store %arg14[%c2, %c0_22], %70 {strides = array<i32>} : memref<16x32xf32, #tpu.memory_space<vmem>>, vector<2x32xf32>,
    %72 = vector.extract_strided_slice %5 {offsets = [4, 0], sizes = [2, 96], strides = [1, 1]} : vector<16x96xf32> to vector<2x96xf32>
    %cst_23 = arith.constant dense<0.000000e+00> : vector<2x96xf32>
    %73 = tpu.matmul %70, %6, %cst_23 {dimension_numbers = #tpu.dot_dimension_numbers<[1], [0], [0], [1], [0, 0, 1, 1], [], []>} : vector<2x32xf32>, vector<32x96xf32>, vector<2x96xf32> -> vector<2x96xf32>
    %74 = vector.broadcast %7 : vector<1x96xf32> to vector<2x96xf32>
    %75 = arith.addf %73, %74 : vector<2x96xf32>
    %76 = vector.extract_strided_slice %72 {offsets = [0, 0], sizes = [2, 32], strides = [1, 1]} : vector<2x96xf32> to vector<2x32xf32>
    %77 = vector.extract_strided_slice %75 {offsets = [0, 0], sizes = [2, 32], strides = [1, 1]} : vector<2x96xf32> to vector<2x32xf32>
    %78 = arith.addf %76, %77 : vector<2x32xf32>
    %79 = arith.negf %78 : vector<2x32xf32>
    %80 = math.exp %79 : vector<2x32xf32>
    %cst_24 = arith.constant 1.000000e+00 : f32
    %81 = vector.broadcast %cst_24 : f32 to vector<2x32xf32>
    %82 = arith.addf %81, %80 : vector<2x32xf32>
    %83 = arith.divf %81, %82 : vector<2x32xf32>
    %84 = vector.extract_strided_slice %72 {offsets = [0, 32], sizes = [2, 32], strides = [1, 1]} : vector<2x96xf32> to vector<2x32xf32>
    %85 = vector.extract_strided_slice %75 {offsets = [0, 32], sizes = [2, 32], strides = [1, 1]} : vector<2x96xf32> to vector<2x32xf32>
    %86 = arith.addf %84, %85 : vector<2x32xf32>
    %87 = arith.negf %86 : vector<2x32xf32>
    %88 = math.exp %87 : vector<2x32xf32>
    %cst_25 = arith.constant 1.000000e+00 : f32
    %89 = vector.broadcast %cst_25 : f32 to vector<2x32xf32>
    %90 = arith.addf %89, %88 : vector<2x32xf32>
    %91 = arith.divf %89, %90 : vector<2x32xf32>
    %92 = vector.extract_strided_slice %72 {offsets = [0, 64], sizes = [2, 32], strides = [1, 1]} : vector<2x96xf32> to vector<2x32xf32>
    %93 = vector.extract_strided_slice %75 {offsets = [0, 64], sizes = [2, 32], strides = [1, 1]} : vector<2x96xf32> to vector<2x32xf32>
    %94 = arith.mulf %83, %93 : vector<2x32xf32>
    %95 = arith.addf %92, %94 : vector<2x32xf32>
    %96 = math.tanh %95 : vector<2x32xf32>
    %cst_26 = arith.constant 1.000000e+00 : f32
    %97 = vector.broadcast %cst_26 : f32 to vector<2x32xf32>
    %98 = arith.subf %97, %91 : vector<2x32xf32>
    %99 = arith.mulf %98, %96 : vector<2x32xf32>
    %100 = arith.mulf %91, %70 : vector<2x32xf32>
    %101 = arith.addf %99, %100 : vector<2x32xf32>
    %c4 = arith.constant 4 : index
    %c0_27 = arith.constant 0 : index
    %102 = vector.load %arg14[%c4, %c0_27] : memref<16x32xf32, #tpu.memory_space<vmem>>, vector<2x32xf32>
    tpu.vector_store %arg14[%c4, %c0_27], %101 {strides = array<i32>} : memref<16x32xf32, #tpu.memory_space<vmem>>, vector<2x32xf32>,
    %103 = vector.extract_strided_slice %5 {offsets = [6, 0], sizes = [2, 96], strides = [1, 1]} : vector<16x96xf32> to vector<2x96xf32>
    %cst_28 = arith.constant dense<0.000000e+00> : vector<2x96xf32>
    %104 = tpu.matmul %101, %6, %cst_28 {dimension_numbers = #tpu.dot_dimension_numbers<[1], [0], [0], [1], [0, 0, 1, 1], [], []>} : vector<2x32xf32>, vector<32x96xf32>, vector<2x96xf32> -> vector<2x96xf32>
    %105 = vector.broadcast %7 : vector<1x96xf32> to vector<2x96xf32>
    %106 = arith.addf %104, %105 : vector<2x96xf32>
    %107 = vector.extract_strided_slice %103 {offsets = [0, 0], sizes = [2, 32], strides = [1, 1]} : vector<2x96xf32> to vector<2x32xf32>
    %108 = vector.extract_strided_slice %106 {offsets = [0, 0], sizes = [2, 32], strides = [1, 1]} : vector<2x96xf32> to vector<2x32xf32>
    %109 = arith.addf %107, %108 : vector<2x32xf32>
    %110 = arith.negf %109 : vector<2x32xf32>
    %111 = math.exp %110 : vector<2x32xf32>
    %cst_29 = arith.constant 1.000000e+00 : f32
    %112 = vector.broadcast %cst_29 : f32 to vector<2x32xf32>
    %113 = arith.addf %112, %111 : vector<2x32xf32>
    %114 = arith.divf %112, %113 : vector<2x32xf32>
    %115 = vector.extract_strided_slice %103 {offsets = [0, 32], sizes = [2, 32], strides = [1, 1]} : vector<2x96xf32> to vector<2x32xf32>
    %116 = vector.extract_strided_slice %106 {offsets = [0, 32], sizes = [2, 32], strides = [1, 1]} : vector<2x96xf32> to vector<2x32xf32>
    %117 = arith.addf %115, %116 : vector<2x32xf32>
    %118 = arith.negf %117 : vector<2x32xf32>
    %119 = math.exp %118 : vector<2x32xf32>
    %cst_30 = arith.constant 1.000000e+00 : f32
    %120 = vector.broadcast %cst_30 : f32 to vector<2x32xf32>
    %121 = arith.addf %120, %119 : vector<2x32xf32>
    %122 = arith.divf %120, %121 : vector<2x32xf32>
    %123 = vector.extract_strided_slice %103 {offsets = [0, 64], sizes = [2, 32], strides = [1, 1]} : vector<2x96xf32> to vector<2x32xf32>
    %124 = vector.extract_strided_slice %106 {offsets = [0, 64], sizes = [2, 32], strides = [1, 1]} : vector<2x96xf32> to vector<2x32xf32>
    %125 = arith.mulf %114, %124 : vector<2x32xf32>
    %126 = arith.addf %123, %125 : vector<2x32xf32>
    %127 = math.tanh %126 : vector<2x32xf32>
    %cst_31 = arith.constant 1.000000e+00 : f32
    %128 = vector.broadcast %cst_31 : f32 to vector<2x32xf32>
    %129 = arith.subf %128, %122 : vector<2x32xf32>
    %130 = arith.mulf %129, %127 : vector<2x32xf32>
    %131 = arith.mulf %122, %101 : vector<2x32xf32>
    %132 = arith.addf %130, %131 : vector<2x32xf32>
    %c6 = arith.constant 6 : index
    %c0_32 = arith.constant 0 : index
    %133 = vector.load %arg14[%c6, %c0_32] : memref<16x32xf32, #tpu.memory_space<vmem>>, vector<2x32xf32>
    tpu.vector_store %arg14[%c6, %c0_32], %132 {strides = array<i32>} : memref<16x32xf32, #tpu.memory_space<vmem>>, vector<2x32xf32>,
    %134 = vector.extract_strided_slice %5 {offsets = [8, 0], sizes = [2, 96], strides = [1, 1]} : vector<16x96xf32> to vector<2x96xf32>
    %cst_33 = arith.constant dense<0.000000e+00> : vector<2x96xf32>
    %135 = tpu.matmul %132, %6, %cst_33 {dimension_numbers = #tpu.dot_dimension_numbers<[1], [0], [0], [1], [0, 0, 1, 1], [], []>} : vector<2x32xf32>, vector<32x96xf32>, vector<2x96xf32> -> vector<2x96xf32>
    %136 = vector.broadcast %7 : vector<1x96xf32> to vector<2x96xf32>
    %137 = arith.addf %135, %136 : vector<2x96xf32>
    %138 = vector.extract_strided_slice %134 {offsets = [0, 0], sizes = [2, 32], strides = [1, 1]} : vector<2x96xf32> to vector<2x32xf32>
    %139 = vector.extract_strided_slice %137 {offsets = [0, 0], sizes = [2, 32], strides = [1, 1]} : vector<2x96xf32> to vector<2x32xf32>
    %140 = arith.addf %138, %139 : vector<2x32xf32>
    %141 = arith.negf %140 : vector<2x32xf32>
    %142 = math.exp %141 : vector<2x32xf32>
    %cst_34 = arith.constant 1.000000e+00 : f32
    %143 = vector.broadcast %cst_34 : f32 to vector<2x32xf32>
    %144 = arith.addf %143, %142 : vector<2x32xf32>
    %145 = arith.divf %143, %144 : vector<2x32xf32>
    %146 = vector.extract_strided_slice %134 {offsets = [0, 32], sizes = [2, 32], strides = [1, 1]} : vector<2x96xf32> to vector<2x32xf32>
    %147 = vector.extract_strided_slice %137 {offsets = [0, 32], sizes = [2, 32], strides = [1, 1]} : vector<2x96xf32> to vector<2x32xf32>
    %148 = arith.addf %146, %147 : vector<2x32xf32>
    %149 = arith.negf %148 : vector<2x32xf32>
    %150 = math.exp %149 : vector<2x32xf32>
    %cst_35 = arith.constant 1.000000e+00 : f32
    %151 = vector.broadcast %cst_35 : f32 to vector<2x32xf32>
    %152 = arith.addf %151, %150 : vector<2x32xf32>
    %153 = arith.divf %151, %152 : vector<2x32xf32>
    %154 = vector.extract_strided_slice %134 {offsets = [0, 64], sizes = [2, 32], strides = [1, 1]} : vector<2x96xf32> to vector<2x32xf32>
    %155 = vector.extract_strided_slice %137 {offsets = [0, 64], sizes = [2, 32], strides = [1, 1]} : vector<2x96xf32> to vector<2x32xf32>
    %156 = arith.mulf %145, %155 : vector<2x32xf32>
    %157 = arith.addf %154, %156 : vector<2x32xf32>
    %158 = math.tanh %157 : vector<2x32xf32>
    %cst_36 = arith.constant 1.000000e+00 : f32
    %159 = vector.broadcast %cst_36 : f32 to vector<2x32xf32>
    %160 = arith.subf %159, %153 : vector<2x32xf32>
    %161 = arith.mulf %160, %158 : vector<2x32xf32>
    %162 = arith.mulf %153, %132 : vector<2x32xf32>
    %163 = arith.addf %161, %162 : vector<2x32xf32>
    %c8 = arith.constant 8 : index
    %c0_37 = arith.constant 0 : index
    %164 = vector.load %arg14[%c8, %c0_37] : memref<16x32xf32, #tpu.memory_space<vmem>>, vector<2x32xf32>
    tpu.vector_store %arg14[%c8, %c0_37], %163 {strides = array<i32>} : memref<16x32xf32, #tpu.memory_space<vmem>>, vector<2x32xf32>,
    %165 = vector.extract_strided_slice %5 {offsets = [10, 0], sizes = [2, 96], strides = [1, 1]} : vector<16x96xf32> to vector<2x96xf32>
    %cst_38 = arith.constant dense<0.000000e+00> : vector<2x96xf32>
    %166 = tpu.matmul %163, %6, %cst_38 {dimension_numbers = #tpu.dot_dimension_numbers<[1], [0], [0], [1], [0, 0, 1, 1], [], []>} : vector<2x32xf32>, vector<32x96xf32>, vector<2x96xf32> -> vector<2x96xf32>
    %167 = vector.broadcast %7 : vector<1x96xf32> to vector<2x96xf32>
    %168 = arith.addf %166, %167 : vector<2x96xf32>
    %169 = vector.extract_strided_slice %165 {offsets = [0, 0], sizes = [2, 32], strides = [1, 1]} : vector<2x96xf32> to vector<2x32xf32>
    %170 = vector.extract_strided_slice %168 {offsets = [0, 0], sizes = [2, 32], strides = [1, 1]} : vector<2x96xf32> to vector<2x32xf32>
    %171 = arith.addf %169, %170 : vector<2x32xf32>
    %172 = arith.negf %171 : vector<2x32xf32>
    %173 = math.exp %172 : vector<2x32xf32>
    %cst_39 = arith.constant 1.000000e+00 : f32
    %174 = vector.broadcast %cst_39 : f32 to vector<2x32xf32>
    %175 = arith.addf %174, %173 : vector<2x32xf32>
    %176 = arith.divf %174, %175 : vector<2x32xf32>
    %177 = vector.extract_strided_slice %165 {offsets = [0, 32], sizes = [2, 32], strides = [1, 1]} : vector<2x96xf32> to vector<2x32xf32>
    %178 = vector.extract_strided_slice %168 {offsets = [0, 32], sizes = [2, 32], strides = [1, 1]} : vector<2x96xf32> to vector<2x32xf32>
    %179 = arith.addf %177, %178 : vector<2x32xf32>
    %180 = arith.negf %179 : vector<2x32xf32>
    %181 = math.exp %180 : vector<2x32xf32>
    %cst_40 = arith.constant 1.000000e+00 : f32
    %182 = vector.broadcast %cst_40 : f32 to vector<2x32xf32>
    %183 = arith.addf %182, %181 : vector<2x32xf32>
    %184 = arith.divf %182, %183 : vector<2x32xf32>
    %185 = vector.extract_strided_slice %165 {offsets = [0, 64], sizes = [2, 32], strides = [1, 1]} : vector<2x96xf32> to vector<2x32xf32>
    %186 = vector.extract_strided_slice %168 {offsets = [0, 64], sizes = [2, 32], strides = [1, 1]} : vector<2x96xf32> to vector<2x32xf32>
    %187 = arith.mulf %176, %186 : vector<2x32xf32>
    %188 = arith.addf %185, %187 : vector<2x32xf32>
    %189 = math.tanh %188 : vector<2x32xf32>
    %cst_41 = arith.constant 1.000000e+00 : f32
    %190 = vector.broadcast %cst_41 : f32 to vector<2x32xf32>
    %191 = arith.subf %190, %184 : vector<2x32xf32>
    %192 = arith.mulf %191, %189 : vector<2x32xf32>
    %193 = arith.mulf %184, %163 : vector<2x32xf32>
    %194 = arith.addf %192, %193 : vector<2x32xf32>
    %c10 = arith.constant 10 : index
    %c0_42 = arith.constant 0 : index
    %195 = vector.load %arg14[%c10, %c0_42] : memref<16x32xf32, #tpu.memory_space<vmem>>, vector<2x32xf32>
    tpu.vector_store %arg14[%c10, %c0_42], %194 {strides = array<i32>} : memref<16x32xf32, #tpu.memory_space<vmem>>, vector<2x32xf32>,
    %196 = vector.extract_strided_slice %5 {offsets = [12, 0], sizes = [2, 96], strides = [1, 1]} : vector<16x96xf32> to vector<2x96xf32>
    %cst_43 = arith.constant dense<0.000000e+00> : vector<2x96xf32>
    %197 = tpu.matmul %194, %6, %cst_43 {dimension_numbers = #tpu.dot_dimension_numbers<[1], [0], [0], [1], [0, 0, 1, 1], [], []>} : vector<2x32xf32>, vector<32x96xf32>, vector<2x96xf32> -> vector<2x96xf32>
    %198 = vector.broadcast %7 : vector<1x96xf32> to vector<2x96xf32>
    %199 = arith.addf %197, %198 : vector<2x96xf32>
    %200 = vector.extract_strided_slice %196 {offsets = [0, 0], sizes = [2, 32], strides = [1, 1]} : vector<2x96xf32> to vector<2x32xf32>
    %201 = vector.extract_strided_slice %199 {offsets = [0, 0], sizes = [2, 32], strides = [1, 1]} : vector<2x96xf32> to vector<2x32xf32>
    %202 = arith.addf %200, %201 : vector<2x32xf32>
    %203 = arith.negf %202 : vector<2x32xf32>
    %204 = math.exp %203 : vector<2x32xf32>
    %cst_44 = arith.constant 1.000000e+00 : f32
    %205 = vector.broadcast %cst_44 : f32 to vector<2x32xf32>
    %206 = arith.addf %205, %204 : vector<2x32xf32>
    %207 = arith.divf %205, %206 : vector<2x32xf32>
    %208 = vector.extract_strided_slice %196 {offsets = [0, 32], sizes = [2, 32], strides = [1, 1]} : vector<2x96xf32> to vector<2x32xf32>
    %209 = vector.extract_strided_slice %199 {offsets = [0, 32], sizes = [2, 32], strides = [1, 1]} : vector<2x96xf32> to vector<2x32xf32>
    %210 = arith.addf %208, %209 : vector<2x32xf32>
    %211 = arith.negf %210 : vector<2x32xf32>
    %212 = math.exp %211 : vector<2x32xf32>
    %cst_45 = arith.constant 1.000000e+00 : f32
    %213 = vector.broadcast %cst_45 : f32 to vector<2x32xf32>
    %214 = arith.addf %213, %212 : vector<2x32xf32>
    %215 = arith.divf %213, %214 : vector<2x32xf32>
    %216 = vector.extract_strided_slice %196 {offsets = [0, 64], sizes = [2, 32], strides = [1, 1]} : vector<2x96xf32> to vector<2x32xf32>
    %217 = vector.extract_strided_slice %199 {offsets = [0, 64], sizes = [2, 32], strides = [1, 1]} : vector<2x96xf32> to vector<2x32xf32>
    %218 = arith.mulf %207, %217 : vector<2x32xf32>
    %219 = arith.addf %216, %218 : vector<2x32xf32>
    %220 = math.tanh %219 : vector<2x32xf32>
    %cst_46 = arith.constant 1.000000e+00 : f32
    %221 = vector.broadcast %cst_46 : f32 to vector<2x32xf32>
    %222 = arith.subf %221, %215 : vector<2x32xf32>
    %223 = arith.mulf %222, %220 : vector<2x32xf32>
    %224 = arith.mulf %215, %194 : vector<2x32xf32>
    %225 = arith.addf %223, %224 : vector<2x32xf32>
    %c12 = arith.constant 12 : index
    %c0_47 = arith.constant 0 : index
    %226 = vector.load %arg14[%c12, %c0_47] : memref<16x32xf32, #tpu.memory_space<vmem>>, vector<2x32xf32>
    tpu.vector_store %arg14[%c12, %c0_47], %225 {strides = array<i32>} : memref<16x32xf32, #tpu.memory_space<vmem>>, vector<2x32xf32>,
    %227 = vector.extract_strided_slice %5 {offsets = [14, 0], sizes = [2, 96], strides = [1, 1]} : vector<16x96xf32> to vector<2x96xf32>
    %cst_48 = arith.constant dense<0.000000e+00> : vector<2x96xf32>
    %228 = tpu.matmul %225, %6, %cst_48 {dimension_numbers = #tpu.dot_dimension_numbers<[1], [0], [0], [1], [0, 0, 1, 1], [], []>} : vector<2x32xf32>, vector<32x96xf32>, vector<2x96xf32> -> vector<2x96xf32>
    %229 = vector.broadcast %7 : vector<1x96xf32> to vector<2x96xf32>
    %230 = arith.addf %228, %229 : vector<2x96xf32>
    %231 = vector.extract_strided_slice %227 {offsets = [0, 0], sizes = [2, 32], strides = [1, 1]} : vector<2x96xf32> to vector<2x32xf32>
    %232 = vector.extract_strided_slice %230 {offsets = [0, 0], sizes = [2, 32], strides = [1, 1]} : vector<2x96xf32> to vector<2x32xf32>
    %233 = arith.addf %231, %232 : vector<2x32xf32>
    %234 = arith.negf %233 : vector<2x32xf32>
    %235 = math.exp %234 : vector<2x32xf32>
    %cst_49 = arith.constant 1.000000e+00 : f32
    %236 = vector.broadcast %cst_49 : f32 to vector<2x32xf32>
    %237 = arith.addf %236, %235 : vector<2x32xf32>
    %238 = arith.divf %236, %237 : vector<2x32xf32>
    %239 = vector.extract_strided_slice %227 {offsets = [0, 32], sizes = [2, 32], strides = [1, 1]} : vector<2x96xf32> to vector<2x32xf32>
    %240 = vector.extract_strided_slice %230 {offsets = [0, 32], sizes = [2, 32], strides = [1, 1]} : vector<2x96xf32> to vector<2x32xf32>
    %241 = arith.addf %239, %240 : vector<2x32xf32>
    %242 = arith.negf %241 : vector<2x32xf32>
    %243 = math.exp %242 : vector<2x32xf32>
    %cst_50 = arith.constant 1.000000e+00 : f32
    %244 = vector.broadcast %cst_50 : f32 to vector<2x32xf32>
    %245 = arith.addf %244, %243 : vector<2x32xf32>
    %246 = arith.divf %244, %245 : vector<2x32xf32>
    %247 = vector.extract_strided_slice %227 {offsets = [0, 64], sizes = [2, 32], strides = [1, 1]} : vector<2x96xf32> to vector<2x32xf32>
    %248 = vector.extract_strided_slice %230 {offsets = [0, 64], sizes = [2, 32], strides = [1, 1]} : vector<2x96xf32> to vector<2x32xf32>
    %249 = arith.mulf %238, %248 : vector<2x32xf32>
    %250 = arith.addf %247, %249 : vector<2x32xf32>
    %251 = math.tanh %250 : vector<2x32xf32>
    %cst_51 = arith.constant 1.000000e+00 : f32
    %252 = vector.broadcast %cst_51 : f32 to vector<2x32xf32>
    %253 = arith.subf %252, %246 : vector<2x32xf32>
    %254 = arith.mulf %253, %251 : vector<2x32xf32>
    %255 = arith.mulf %246, %225 : vector<2x32xf32>
    %256 = arith.addf %254, %255 : vector<2x32xf32>
    %c14 = arith.constant 14 : index
    %c0_52 = arith.constant 0 : index
    %257 = vector.load %arg14[%c14, %c0_52] : memref<16x32xf32, #tpu.memory_space<vmem>>, vector<2x32xf32>
    tpu.vector_store %arg14[%c14, %c0_52], %256 {strides = array<i32>} : memref<16x32xf32, #tpu.memory_space<vmem>>, vector<2x32xf32>,
    %c0_53 = arith.constant 0 : index
    %c0_54 = arith.constant 0 : index
    %258 = vector.load %arg14[%c0_53, %c0_54] : memref<16x32xf32, #tpu.memory_space<vmem>>, vector<16x32xf32>
    %c0_55 = arith.constant 0 : index
    %c0_56 = arith.constant 0 : index
    %259 = vector.load %arg5[%c0_55, %c0_56] : memref<32x96xf32, #tpu.memory_space<vmem>>, vector<32x96xf32>
    %cst_57 = arith.constant dense<0.000000e+00> : vector<16x96xf32>
    %260 = tpu.matmul %258, %259, %cst_57 {dimension_numbers = #tpu.dot_dimension_numbers<[1], [0], [0], [1], [0, 0, 1, 1], [], []>} : vector<16x32xf32>, vector<32x96xf32>, vector<16x96xf32> -> vector<16x96xf32>
    %c0_58 = arith.constant 0 : index
    %c0_59 = arith.constant 0 : index
    %261 = vector.load %arg7[%c0_58, %c0_59] : memref<1x96xf32, #tpu.memory_space<vmem>>, vector<1x96xf32>
    %262 = vector.broadcast %261 : vector<1x96xf32> to vector<16x96xf32>
    %263 = arith.addf %260, %262 : vector<16x96xf32>
    %c0_60 = arith.constant 0 : index
    %c0_61 = arith.constant 0 : index
    %264 = vector.load %arg6[%c0_60, %c0_61] : memref<32x96xf32, #tpu.memory_space<vmem>>, vector<32x96xf32>
    %c0_62 = arith.constant 0 : index
    %c0_63 = arith.constant 0 : index
    %265 = vector.load %arg8[%c0_62, %c0_63] : memref<1x96xf32, #tpu.memory_space<vmem>>, vector<1x96xf32>
    %c1 = arith.constant 1 : index
    %c0_64 = arith.constant 0 : index
    %c0_65 = arith.constant 0 : index
    %266 = vector.load %arg11[%c1, %c0_64, %c0_65] : memref<2x2x32xf32, #tpu.memory_space<vmem>>, vector<1x2x32xf32>
    %267 = vector.shape_cast %266 : vector<1x2x32xf32> to vector<2x32xf32>
    %268 = vector.extract_strided_slice %263 {offsets = [0, 0], sizes = [2, 96], strides = [1, 1]} : vector<16x96xf32> to vector<2x96xf32>
    %cst_66 = arith.constant dense<0.000000e+00> : vector<2x96xf32>
    %269 = tpu.matmul %267, %264, %cst_66 {dimension_numbers = #tpu.dot_dimension_numbers<[1], [0], [0], [1], [0, 0, 1, 1], [], []>} : vector<2x32xf32>, vector<32x96xf32>, vector<2x96xf32> -> vector<2x96xf32>
    %270 = vector.broadcast %265 : vector<1x96xf32> to vector<2x96xf32>
    %271 = arith.addf %269, %270 : vector<2x96xf32>
    %272 = vector.extract_strided_slice %268 {offsets = [0, 0], sizes = [2, 32], strides = [1, 1]} : vector<2x96xf32> to vector<2x32xf32>
    %273 = vector.extract_strided_slice %271 {offsets = [0, 0], sizes = [2, 32], strides = [1, 1]} : vector<2x96xf32> to vector<2x32xf32>
    %274 = arith.addf %272, %273 : vector<2x32xf32>
    %275 = arith.negf %274 : vector<2x32xf32>
    %276 = math.exp %275 : vector<2x32xf32>
    %cst_67 = arith.constant 1.000000e+00 : f32
    %277 = vector.broadcast %cst_67 : f32 to vector<2x32xf32>
    %278 = arith.addf %277, %276 : vector<2x32xf32>
    %279 = arith.divf %277, %278 : vector<2x32xf32>
    %280 = vector.extract_strided_slice %268 {offsets = [0, 32], sizes = [2, 32], strides = [1, 1]} : vector<2x96xf32> to vector<2x32xf32>
    %281 = vector.extract_strided_slice %271 {offsets = [0, 32], sizes = [2, 32], strides = [1, 1]} : vector<2x96xf32> to vector<2x32xf32>
    %282 = arith.addf %280, %281 : vector<2x32xf32>
    %283 = arith.negf %282 : vector<2x32xf32>
    %284 = math.exp %283 : vector<2x32xf32>
    %cst_68 = arith.constant 1.000000e+00 : f32
    %285 = vector.broadcast %cst_68 : f32 to vector<2x32xf32>
    %286 = arith.addf %285, %284 : vector<2x32xf32>
    %287 = arith.divf %285, %286 : vector<2x32xf32>
    %288 = vector.extract_strided_slice %268 {offsets = [0, 64], sizes = [2, 32], strides = [1, 1]} : vector<2x96xf32> to vector<2x32xf32>
    %289 = vector.extract_strided_slice %271 {offsets = [0, 64], sizes = [2, 32], strides = [1, 1]} : vector<2x96xf32> to vector<2x32xf32>
    %290 = arith.mulf %279, %289 : vector<2x32xf32>
    %291 = arith.addf %288, %290 : vector<2x32xf32>
    %292 = math.tanh %291 : vector<2x32xf32>
    %cst_69 = arith.constant 1.000000e+00 : f32
    %293 = vector.broadcast %cst_69 : f32 to vector<2x32xf32>
    %294 = arith.subf %293, %287 : vector<2x32xf32>
    %295 = arith.mulf %294, %292 : vector<2x32xf32>
    %296 = arith.mulf %287, %267 : vector<2x32xf32>
    %297 = arith.addf %295, %296 : vector<2x32xf32>
    %c0_70 = arith.constant 0 : index
    %c0_71 = arith.constant 0 : index
    %298 = vector.load %arg15[%c0_70, %c0_71] : memref<16x32xf32, #tpu.memory_space<vmem>>, vector<2x32xf32>
    tpu.vector_store %arg15[%c0_70, %c0_71], %297 {strides = array<i32>} : memref<16x32xf32, #tpu.memory_space<vmem>>, vector<2x32xf32>,
    %299 = vector.extract_strided_slice %263 {offsets = [2, 0], sizes = [2, 96], strides = [1, 1]} : vector<16x96xf32> to vector<2x96xf32>
    %cst_72 = arith.constant dense<0.000000e+00> : vector<2x96xf32>
    %300 = tpu.matmul %297, %264, %cst_72 {dimension_numbers = #tpu.dot_dimension_numbers<[1], [0], [0], [1], [0, 0, 1, 1], [], []>} : vector<2x32xf32>, vector<32x96xf32>, vector<2x96xf32> -> vector<2x96xf32>
    %301 = vector.broadcast %265 : vector<1x96xf32> to vector<2x96xf32>
    %302 = arith.addf %300, %301 : vector<2x96xf32>
    %303 = vector.extract_strided_slice %299 {offsets = [0, 0], sizes = [2, 32], strides = [1, 1]} : vector<2x96xf32> to vector<2x32xf32>
    %304 = vector.extract_strided_slice %302 {offsets = [0, 0], sizes = [2, 32], strides = [1, 1]} : vector<2x96xf32> to vector<2x32xf32>
    %305 = arith.addf %303, %304 : vector<2x32xf32>
    %306 = arith.negf %305 : vector<2x32xf32>
    %307 = math.exp %306 : vector<2x32xf32>
    %cst_73 = arith.constant 1.000000e+00 : f32
    %308 = vector.broadcast %cst_73 : f32 to vector<2x32xf32>
    %309 = arith.addf %308, %307 : vector<2x32xf32>
    %310 = arith.divf %308, %309 : vector<2x32xf32>
    %311 = vector.extract_strided_slice %299 {offsets = [0, 32], sizes = [2, 32], strides = [1, 1]} : vector<2x96xf32> to vector<2x32xf32>
    %312 = vector.extract_strided_slice %302 {offsets = [0, 32], sizes = [2, 32], strides = [1, 1]} : vector<2x96xf32> to vector<2x32xf32>
    %313 = arith.addf %311, %312 : vector<2x32xf32>
    %314 = arith.negf %313 : vector<2x32xf32>
    %315 = math.exp %314 : vector<2x32xf32>
    %cst_74 = arith.constant 1.000000e+00 : f32
    %316 = vector.broadcast %cst_74 : f32 to vector<2x32xf32>
    %317 = arith.addf %316, %315 : vector<2x32xf32>
    %318 = arith.divf %316, %317 : vector<2x32xf32>
    %319 = vector.extract_strided_slice %299 {offsets = [0, 64], sizes = [2, 32], strides = [1, 1]} : vector<2x96xf32> to vector<2x32xf32>
    %320 = vector.extract_strided_slice %302 {offsets = [0, 64], sizes = [2, 32], strides = [1, 1]} : vector<2x96xf32> to vector<2x32xf32>
    %321 = arith.mulf %310, %320 : vector<2x32xf32>
    %322 = arith.addf %319, %321 : vector<2x32xf32>
    %323 = math.tanh %322 : vector<2x32xf32>
    %cst_75 = arith.constant 1.000000e+00 : f32
    %324 = vector.broadcast %cst_75 : f32 to vector<2x32xf32>
    %325 = arith.subf %324, %318 : vector<2x32xf32>
    %326 = arith.mulf %325, %323 : vector<2x32xf32>
    %327 = arith.mulf %318, %297 : vector<2x32xf32>
    %328 = arith.addf %326, %327 : vector<2x32xf32>
    %c2_76 = arith.constant 2 : index
    %c0_77 = arith.constant 0 : index
    %329 = vector.load %arg15[%c2_76, %c0_77] : memref<16x32xf32, #tpu.memory_space<vmem>>, vector<2x32xf32>
    tpu.vector_store %arg15[%c2_76, %c0_77], %328 {strides = array<i32>} : memref<16x32xf32, #tpu.memory_space<vmem>>, vector<2x32xf32>,
    %330 = vector.extract_strided_slice %263 {offsets = [4, 0], sizes = [2, 96], strides = [1, 1]} : vector<16x96xf32> to vector<2x96xf32>
    %cst_78 = arith.constant dense<0.000000e+00> : vector<2x96xf32>
    %331 = tpu.matmul %328, %264, %cst_78 {dimension_numbers = #tpu.dot_dimension_numbers<[1], [0], [0], [1], [0, 0, 1, 1], [], []>} : vector<2x32xf32>, vector<32x96xf32>, vector<2x96xf32> -> vector<2x96xf32>
    %332 = vector.broadcast %265 : vector<1x96xf32> to vector<2x96xf32>
    %333 = arith.addf %331, %332 : vector<2x96xf32>
    %334 = vector.extract_strided_slice %330 {offsets = [0, 0], sizes = [2, 32], strides = [1, 1]} : vector<2x96xf32> to vector<2x32xf32>
    %335 = vector.extract_strided_slice %333 {offsets = [0, 0], sizes = [2, 32], strides = [1, 1]} : vector<2x96xf32> to vector<2x32xf32>
    %336 = arith.addf %334, %335 : vector<2x32xf32>
    %337 = arith.negf %336 : vector<2x32xf32>
    %338 = math.exp %337 : vector<2x32xf32>
    %cst_79 = arith.constant 1.000000e+00 : f32
    %339 = vector.broadcast %cst_79 : f32 to vector<2x32xf32>
    %340 = arith.addf %339, %338 : vector<2x32xf32>
    %341 = arith.divf %339, %340 : vector<2x32xf32>
    %342 = vector.extract_strided_slice %330 {offsets = [0, 32], sizes = [2, 32], strides = [1, 1]} : vector<2x96xf32> to vector<2x32xf32>
    %343 = vector.extract_strided_slice %333 {offsets = [0, 32], sizes = [2, 32], strides = [1, 1]} : vector<2x96xf32> to vector<2x32xf32>
    %344 = arith.addf %342, %343 : vector<2x32xf32>
    %345 = arith.negf %344 : vector<2x32xf32>
    %346 = math.exp %345 : vector<2x32xf32>
    %cst_80 = arith.constant 1.000000e+00 : f32
    %347 = vector.broadcast %cst_80 : f32 to vector<2x32xf32>
    %348 = arith.addf %347, %346 : vector<2x32xf32>
    %349 = arith.divf %347, %348 : vector<2x32xf32>
    %350 = vector.extract_strided_slice %330 {offsets = [0, 64], sizes = [2, 32], strides = [1, 1]} : vector<2x96xf32> to vector<2x32xf32>
    %351 = vector.extract_strided_slice %333 {offsets = [0, 64], sizes = [2, 32], strides = [1, 1]} : vector<2x96xf32> to vector<2x32xf32>
    %352 = arith.mulf %341, %351 : vector<2x32xf32>
    %353 = arith.addf %350, %352 : vector<2x32xf32>
    %354 = math.tanh %353 : vector<2x32xf32>
    %cst_81 = arith.constant 1.000000e+00 : f32
    %355 = vector.broadcast %cst_81 : f32 to vector<2x32xf32>
    %356 = arith.subf %355, %349 : vector<2x32xf32>
    %357 = arith.mulf %356, %354 : vector<2x32xf32>
    %358 = arith.mulf %349, %328 : vector<2x32xf32>
    %359 = arith.addf %357, %358 : vector<2x32xf32>
    %c4_82 = arith.constant 4 : index
    %c0_83 = arith.constant 0 : index
    %360 = vector.load %arg15[%c4_82, %c0_83] : memref<16x32xf32, #tpu.memory_space<vmem>>, vector<2x32xf32>
    tpu.vector_store %arg15[%c4_82, %c0_83], %359 {strides = array<i32>} : memref<16x32xf32, #tpu.memory_space<vmem>>, vector<2x32xf32>,
    %361 = vector.extract_strided_slice %263 {offsets = [6, 0], sizes = [2, 96], strides = [1, 1]} : vector<16x96xf32> to vector<2x96xf32>
    %cst_84 = arith.constant dense<0.000000e+00> : vector<2x96xf32>
    %362 = tpu.matmul %359, %264, %cst_84 {dimension_numbers = #tpu.dot_dimension_numbers<[1], [0], [0], [1], [0, 0, 1, 1], [], []>} : vector<2x32xf32>, vector<32x96xf32>, vector<2x96xf32> -> vector<2x96xf32>
    %363 = vector.broadcast %265 : vector<1x96xf32> to vector<2x96xf32>
    %364 = arith.addf %362, %363 : vector<2x96xf32>
    %365 = vector.extract_strided_slice %361 {offsets = [0, 0], sizes = [2, 32], strides = [1, 1]} : vector<2x96xf32> to vector<2x32xf32>
    %366 = vector.extract_strided_slice %364 {offsets = [0, 0], sizes = [2, 32], strides = [1, 1]} : vector<2x96xf32> to vector<2x32xf32>
    %367 = arith.addf %365, %366 : vector<2x32xf32>
    %368 = arith.negf %367 : vector<2x32xf32>
    %369 = math.exp %368 : vector<2x32xf32>
    %cst_85 = arith.constant 1.000000e+00 : f32
    %370 = vector.broadcast %cst_85 : f32 to vector<2x32xf32>
    %371 = arith.addf %370, %369 : vector<2x32xf32>
    %372 = arith.divf %370, %371 : vector<2x32xf32>
    %373 = vector.extract_strided_slice %361 {offsets = [0, 32], sizes = [2, 32], strides = [1, 1]} : vector<2x96xf32> to vector<2x32xf32>
    %374 = vector.extract_strided_slice %364 {offsets = [0, 32], sizes = [2, 32], strides = [1, 1]} : vector<2x96xf32> to vector<2x32xf32>
    %375 = arith.addf %373, %374 : vector<2x32xf32>
    %376 = arith.negf %375 : vector<2x32xf32>
    %377 = math.exp %376 : vector<2x32xf32>
    %cst_86 = arith.constant 1.000000e+00 : f32
    %378 = vector.broadcast %cst_86 : f32 to vector<2x32xf32>
    %379 = arith.addf %378, %377 : vector<2x32xf32>
    %380 = arith.divf %378, %379 : vector<2x32xf32>
    %381 = vector.extract_strided_slice %361 {offsets = [0, 64], sizes = [2, 32], strides = [1, 1]} : vector<2x96xf32> to vector<2x32xf32>
    %382 = vector.extract_strided_slice %364 {offsets = [0, 64], sizes = [2, 32], strides = [1, 1]} : vector<2x96xf32> to vector<2x32xf32>
    %383 = arith.mulf %372, %382 : vector<2x32xf32>
    %384 = arith.addf %381, %383 : vector<2x32xf32>
    %385 = math.tanh %384 : vector<2x32xf32>
    %cst_87 = arith.constant 1.000000e+00 : f32
    %386 = vector.broadcast %cst_87 : f32 to vector<2x32xf32>
    %387 = arith.subf %386, %380 : vector<2x32xf32>
    %388 = arith.mulf %387, %385 : vector<2x32xf32>
    %389 = arith.mulf %380, %359 : vector<2x32xf32>
    %390 = arith.addf %388, %389 : vector<2x32xf32>
    %c6_88 = arith.constant 6 : index
    %c0_89 = arith.constant 0 : index
    %391 = vector.load %arg15[%c6_88, %c0_89] : memref<16x32xf32, #tpu.memory_space<vmem>>, vector<2x32xf32>
    tpu.vector_store %arg15[%c6_88, %c0_89], %390 {strides = array<i32>} : memref<16x32xf32, #tpu.memory_space<vmem>>, vector<2x32xf32>,
    %392 = vector.extract_strided_slice %263 {offsets = [8, 0], sizes = [2, 96], strides = [1, 1]} : vector<16x96xf32> to vector<2x96xf32>
    %cst_90 = arith.constant dense<0.000000e+00> : vector<2x96xf32>
    %393 = tpu.matmul %390, %264, %cst_90 {dimension_numbers = #tpu.dot_dimension_numbers<[1], [0], [0], [1], [0, 0, 1, 1], [], []>} : vector<2x32xf32>, vector<32x96xf32>, vector<2x96xf32> -> vector<2x96xf32>
    %394 = vector.broadcast %265 : vector<1x96xf32> to vector<2x96xf32>
    %395 = arith.addf %393, %394 : vector<2x96xf32>
    %396 = vector.extract_strided_slice %392 {offsets = [0, 0], sizes = [2, 32], strides = [1, 1]} : vector<2x96xf32> to vector<2x32xf32>
    %397 = vector.extract_strided_slice %395 {offsets = [0, 0], sizes = [2, 32], strides = [1, 1]} : vector<2x96xf32> to vector<2x32xf32>
    %398 = arith.addf %396, %397 : vector<2x32xf32>
    %399 = arith.negf %398 : vector<2x32xf32>
    %400 = math.exp %399 : vector<2x32xf32>
    %cst_91 = arith.constant 1.000000e+00 : f32
    %401 = vector.broadcast %cst_91 : f32 to vector<2x32xf32>
    %402 = arith.addf %401, %400 : vector<2x32xf32>
    %403 = arith.divf %401, %402 : vector<2x32xf32>
    %404 = vector.extract_strided_slice %392 {offsets = [0, 32], sizes = [2, 32], strides = [1, 1]} : vector<2x96xf32> to vector<2x32xf32>
    %405 = vector.extract_strided_slice %395 {offsets = [0, 32], sizes = [2, 32], strides = [1, 1]} : vector<2x96xf32> to vector<2x32xf32>
    %406 = arith.addf %404, %405 : vector<2x32xf32>
    %407 = arith.negf %406 : vector<2x32xf32>
    %408 = math.exp %407 : vector<2x32xf32>
    %cst_92 = arith.constant 1.000000e+00 : f32
    %409 = vector.broadcast %cst_92 : f32 to vector<2x32xf32>
    %410 = arith.addf %409, %408 : vector<2x32xf32>
    %411 = arith.divf %409, %410 : vector<2x32xf32>
    %412 = vector.extract_strided_slice %392 {offsets = [0, 64], sizes = [2, 32], strides = [1, 1]} : vector<2x96xf32> to vector<2x32xf32>
    %413 = vector.extract_strided_slice %395 {offsets = [0, 64], sizes = [2, 32], strides = [1, 1]} : vector<2x96xf32> to vector<2x32xf32>
    %414 = arith.mulf %403, %413 : vector<2x32xf32>
    %415 = arith.addf %412, %414 : vector<2x32xf32>
    %416 = math.tanh %415 : vector<2x32xf32>
    %cst_93 = arith.constant 1.000000e+00 : f32
    %417 = vector.broadcast %cst_93 : f32 to vector<2x32xf32>
    %418 = arith.subf %417, %411 : vector<2x32xf32>
    %419 = arith.mulf %418, %416 : vector<2x32xf32>
    %420 = arith.mulf %411, %390 : vector<2x32xf32>
    %421 = arith.addf %419, %420 : vector<2x32xf32>
    %c8_94 = arith.constant 8 : index
    %c0_95 = arith.constant 0 : index
    %422 = vector.load %arg15[%c8_94, %c0_95] : memref<16x32xf32, #tpu.memory_space<vmem>>, vector<2x32xf32>
    tpu.vector_store %arg15[%c8_94, %c0_95], %421 {strides = array<i32>} : memref<16x32xf32, #tpu.memory_space<vmem>>, vector<2x32xf32>,
    %423 = vector.extract_strided_slice %263 {offsets = [10, 0], sizes = [2, 96], strides = [1, 1]} : vector<16x96xf32> to vector<2x96xf32>
    %cst_96 = arith.constant dense<0.000000e+00> : vector<2x96xf32>
    %424 = tpu.matmul %421, %264, %cst_96 {dimension_numbers = #tpu.dot_dimension_numbers<[1], [0], [0], [1], [0, 0, 1, 1], [], []>} : vector<2x32xf32>, vector<32x96xf32>, vector<2x96xf32> -> vector<2x96xf32>
    %425 = vector.broadcast %265 : vector<1x96xf32> to vector<2x96xf32>
    %426 = arith.addf %424, %425 : vector<2x96xf32>
    %427 = vector.extract_strided_slice %423 {offsets = [0, 0], sizes = [2, 32], strides = [1, 1]} : vector<2x96xf32> to vector<2x32xf32>
    %428 = vector.extract_strided_slice %426 {offsets = [0, 0], sizes = [2, 32], strides = [1, 1]} : vector<2x96xf32> to vector<2x32xf32>
    %429 = arith.addf %427, %428 : vector<2x32xf32>
    %430 = arith.negf %429 : vector<2x32xf32>
    %431 = math.exp %430 : vector<2x32xf32>
    %cst_97 = arith.constant 1.000000e+00 : f32
    %432 = vector.broadcast %cst_97 : f32 to vector<2x32xf32>
    %433 = arith.addf %432, %431 : vector<2x32xf32>
    %434 = arith.divf %432, %433 : vector<2x32xf32>
    %435 = vector.extract_strided_slice %423 {offsets = [0, 32], sizes = [2, 32], strides = [1, 1]} : vector<2x96xf32> to vector<2x32xf32>
    %436 = vector.extract_strided_slice %426 {offsets = [0, 32], sizes = [2, 32], strides = [1, 1]} : vector<2x96xf32> to vector<2x32xf32>
    %437 = arith.addf %435, %436 : vector<2x32xf32>
    %438 = arith.negf %437 : vector<2x32xf32>
    %439 = math.exp %438 : vector<2x32xf32>
    %cst_98 = arith.constant 1.000000e+00 : f32
    %440 = vector.broadcast %cst_98 : f32 to vector<2x32xf32>
    %441 = arith.addf %440, %439 : vector<2x32xf32>
    %442 = arith.divf %440, %441 : vector<2x32xf32>
    %443 = vector.extract_strided_slice %423 {offsets = [0, 64], sizes = [2, 32], strides = [1, 1]} : vector<2x96xf32> to vector<2x32xf32>
    %444 = vector.extract_strided_slice %426 {offsets = [0, 64], sizes = [2, 32], strides = [1, 1]} : vector<2x96xf32> to vector<2x32xf32>
    %445 = arith.mulf %434, %444 : vector<2x32xf32>
    %446 = arith.addf %443, %445 : vector<2x32xf32>
    %447 = math.tanh %446 : vector<2x32xf32>
    %cst_99 = arith.constant 1.000000e+00 : f32
    %448 = vector.broadcast %cst_99 : f32 to vector<2x32xf32>
    %449 = arith.subf %448, %442 : vector<2x32xf32>
    %450 = arith.mulf %449, %447 : vector<2x32xf32>
    %451 = arith.mulf %442, %421 : vector<2x32xf32>
    %452 = arith.addf %450, %451 : vector<2x32xf32>
    %c10_100 = arith.constant 10 : index
    %c0_101 = arith.constant 0 : index
    %453 = vector.load %arg15[%c10_100, %c0_101] : memref<16x32xf32, #tpu.memory_space<vmem>>, vector<2x32xf32>
    tpu.vector_store %arg15[%c10_100, %c0_101], %452 {strides = array<i32>} : memref<16x32xf32, #tpu.memory_space<vmem>>, vector<2x32xf32>,
    %454 = vector.extract_strided_slice %263 {offsets = [12, 0], sizes = [2, 96], strides = [1, 1]} : vector<16x96xf32> to vector<2x96xf32>
    %cst_102 = arith.constant dense<0.000000e+00> : vector<2x96xf32>
    %455 = tpu.matmul %452, %264, %cst_102 {dimension_numbers = #tpu.dot_dimension_numbers<[1], [0], [0], [1], [0, 0, 1, 1], [], []>} : vector<2x32xf32>, vector<32x96xf32>, vector<2x96xf32> -> vector<2x96xf32>
    %456 = vector.broadcast %265 : vector<1x96xf32> to vector<2x96xf32>
    %457 = arith.addf %455, %456 : vector<2x96xf32>
    %458 = vector.extract_strided_slice %454 {offsets = [0, 0], sizes = [2, 32], strides = [1, 1]} : vector<2x96xf32> to vector<2x32xf32>
    %459 = vector.extract_strided_slice %457 {offsets = [0, 0], sizes = [2, 32], strides = [1, 1]} : vector<2x96xf32> to vector<2x32xf32>
    %460 = arith.addf %458, %459 : vector<2x32xf32>
    %461 = arith.negf %460 : vector<2x32xf32>
    %462 = math.exp %461 : vector<2x32xf32>
    %cst_103 = arith.constant 1.000000e+00 : f32
    %463 = vector.broadcast %cst_103 : f32 to vector<2x32xf32>
    %464 = arith.addf %463, %462 : vector<2x32xf32>
    %465 = arith.divf %463, %464 : vector<2x32xf32>
    %466 = vector.extract_strided_slice %454 {offsets = [0, 32], sizes = [2, 32], strides = [1, 1]} : vector<2x96xf32> to vector<2x32xf32>
    %467 = vector.extract_strided_slice %457 {offsets = [0, 32], sizes = [2, 32], strides = [1, 1]} : vector<2x96xf32> to vector<2x32xf32>
    %468 = arith.addf %466, %467 : vector<2x32xf32>
    %469 = arith.negf %468 : vector<2x32xf32>
    %470 = math.exp %469 : vector<2x32xf32>
    %cst_104 = arith.constant 1.000000e+00 : f32
    %471 = vector.broadcast %cst_104 : f32 to vector<2x32xf32>
    %472 = arith.addf %471, %470 : vector<2x32xf32>
    %473 = arith.divf %471, %472 : vector<2x32xf32>
    %474 = vector.extract_strided_slice %454 {offsets = [0, 64], sizes = [2, 32], strides = [1, 1]} : vector<2x96xf32> to vector<2x32xf32>
    %475 = vector.extract_strided_slice %457 {offsets = [0, 64], sizes = [2, 32], strides = [1, 1]} : vector<2x96xf32> to vector<2x32xf32>
    %476 = arith.mulf %465, %475 : vector<2x32xf32>
    %477 = arith.addf %474, %476 : vector<2x32xf32>
    %478 = math.tanh %477 : vector<2x32xf32>
    %cst_105 = arith.constant 1.000000e+00 : f32
    %479 = vector.broadcast %cst_105 : f32 to vector<2x32xf32>
    %480 = arith.subf %479, %473 : vector<2x32xf32>
    %481 = arith.mulf %480, %478 : vector<2x32xf32>
    %482 = arith.mulf %473, %452 : vector<2x32xf32>
    %483 = arith.addf %481, %482 : vector<2x32xf32>
    %c12_106 = arith.constant 12 : index
    %c0_107 = arith.constant 0 : index
    %484 = vector.load %arg15[%c12_106, %c0_107] : memref<16x32xf32, #tpu.memory_space<vmem>>, vector<2x32xf32>
    tpu.vector_store %arg15[%c12_106, %c0_107], %483 {strides = array<i32>} : memref<16x32xf32, #tpu.memory_space<vmem>>, vector<2x32xf32>,
    %485 = vector.extract_strided_slice %263 {offsets = [14, 0], sizes = [2, 96], strides = [1, 1]} : vector<16x96xf32> to vector<2x96xf32>
    %cst_108 = arith.constant dense<0.000000e+00> : vector<2x96xf32>
    %486 = tpu.matmul %483, %264, %cst_108 {dimension_numbers = #tpu.dot_dimension_numbers<[1], [0], [0], [1], [0, 0, 1, 1], [], []>} : vector<2x32xf32>, vector<32x96xf32>, vector<2x96xf32> -> vector<2x96xf32>
    %487 = vector.broadcast %265 : vector<1x96xf32> to vector<2x96xf32>
    %488 = arith.addf %486, %487 : vector<2x96xf32>
    %489 = vector.extract_strided_slice %485 {offsets = [0, 0], sizes = [2, 32], strides = [1, 1]} : vector<2x96xf32> to vector<2x32xf32>
    %490 = vector.extract_strided_slice %488 {offsets = [0, 0], sizes = [2, 32], strides = [1, 1]} : vector<2x96xf32> to vector<2x32xf32>
    %491 = arith.addf %489, %490 : vector<2x32xf32>
    %492 = arith.negf %491 : vector<2x32xf32>
    %493 = math.exp %492 : vector<2x32xf32>
    %cst_109 = arith.constant 1.000000e+00 : f32
    %494 = vector.broadcast %cst_109 : f32 to vector<2x32xf32>
    %495 = arith.addf %494, %493 : vector<2x32xf32>
    %496 = arith.divf %494, %495 : vector<2x32xf32>
    %497 = vector.extract_strided_slice %485 {offsets = [0, 32], sizes = [2, 32], strides = [1, 1]} : vector<2x96xf32> to vector<2x32xf32>
    %498 = vector.extract_strided_slice %488 {offsets = [0, 32], sizes = [2, 32], strides = [1, 1]} : vector<2x96xf32> to vector<2x32xf32>
    %499 = arith.addf %497, %498 : vector<2x32xf32>
    %500 = arith.negf %499 : vector<2x32xf32>
    %501 = math.exp %500 : vector<2x32xf32>
    %cst_110 = arith.constant 1.000000e+00 : f32
    %502 = vector.broadcast %cst_110 : f32 to vector<2x32xf32>
    %503 = arith.addf %502, %501 : vector<2x32xf32>
    %504 = arith.divf %502, %503 : vector<2x32xf32>
    %505 = vector.extract_strided_slice %485 {offsets = [0, 64], sizes = [2, 32], strides = [1, 1]} : vector<2x96xf32> to vector<2x32xf32>
    %506 = vector.extract_strided_slice %488 {offsets = [0, 64], sizes = [2, 32], strides = [1, 1]} : vector<2x96xf32> to vector<2x32xf32>
    %507 = arith.mulf %496, %506 : vector<2x32xf32>
    %508 = arith.addf %505, %507 : vector<2x32xf32>
    %509 = math.tanh %508 : vector<2x32xf32>
    %cst_111 = arith.constant 1.000000e+00 : f32
    %510 = vector.broadcast %cst_111 : f32 to vector<2x32xf32>
    %511 = arith.subf %510, %504 : vector<2x32xf32>
    %512 = arith.mulf %511, %509 : vector<2x32xf32>
    %513 = arith.mulf %504, %483 : vector<2x32xf32>
    %514 = arith.addf %512, %513 : vector<2x32xf32>
    %c14_112 = arith.constant 14 : index
    %c0_113 = arith.constant 0 : index
    %515 = vector.load %arg15[%c14_112, %c0_113] : memref<16x32xf32, #tpu.memory_space<vmem>>, vector<2x32xf32>
    tpu.vector_store %arg15[%c14_112, %c0_113], %514 {strides = array<i32>} : memref<16x32xf32, #tpu.memory_space<vmem>>, vector<2x32xf32>,
    %c0_114 = arith.constant 0 : index
    %c0_115 = arith.constant 0 : index
    %516 = vector.load %arg15[%c0_114, %c0_115] : memref<16x32xf32, #tpu.memory_space<vmem>>, vector<16x32xf32>
    %c0_116 = arith.constant 0 : index
    %c0_117 = arith.constant 0 : index
    %517 = vector.load %arg9[%c0_116, %c0_117] : memref<32x16xf32, #tpu.memory_space<vmem>>, vector<32x16xf32>
    %cst_118 = arith.constant dense<0.000000e+00> : vector<16x16xf32>
    %518 = tpu.matmul %516, %517, %cst_118 {dimension_numbers = #tpu.dot_dimension_numbers<[1], [0], [0], [1], [0, 0, 1, 1], [], []>} : vector<16x32xf32>, vector<32x16xf32>, vector<16x16xf32> -> vector<16x16xf32>
    %c0_119 = arith.constant 0 : index
    %c0_120 = arith.constant 0 : index
    %519 = vector.load %arg10[%c0_119, %c0_120] : memref<1x16xf32, #tpu.memory_space<vmem>>, vector<1x16xf32>
    %520 = vector.broadcast %519 : vector<1x16xf32> to vector<16x16xf32>
    %521 = arith.addf %518, %520 : vector<16x16xf32>
    %522 = math.tanh %521 : vector<16x16xf32>
    %c0_121 = arith.constant 0 : index
    %c0_122 = arith.constant 0 : index
    %523 = vector.load %arg12[%c0_121, %c0_122] : memref<16x16xf32, #tpu.memory_space<vmem>>, vector<16x16xf32>
    tpu.vector_store %arg12[%c0_121, %c0_122], %522 {strides = array<i32>} : memref<16x16xf32, #tpu.memory_space<vmem>>, vector<16x16xf32>,
    %c0_123 = arith.constant 0 : index
    %c0_124 = arith.constant 0 : index
    %c0_125 = arith.constant 0 : index
    %524 = vector.load %arg13[%c0_123, %c0_124, %c0_125] : memref<2x2x32xf32, #tpu.memory_space<vmem>>, vector<1x2x32xf32>
    %525 = vector.shape_cast %524 : vector<1x2x32xf32> to vector<2x32xf32>
    %526 = vector.shape_cast %256 : vector<2x32xf32> to vector<1x2x32xf32>
    tpu.vector_store %arg13[%c0_123, %c0_124, %c0_125], %526 {strides = array<i32>} : memref<2x2x32xf32, #tpu.memory_space<vmem>>, vector<1x2x32xf32>,
    %c1_126 = arith.constant 1 : index
    %c0_127 = arith.constant 0 : index
    %c0_128 = arith.constant 0 : index
    %527 = vector.load %arg13[%c1_126, %c0_127, %c0_128] : memref<2x2x32xf32, #tpu.memory_space<vmem>>, vector<1x2x32xf32>
    %528 = vector.shape_cast %527 : vector<1x2x32xf32> to vector<2x32xf32>
    %529 = vector.shape_cast %514 : vector<2x32xf32> to vector<1x2x32xf32>
    tpu.vector_store %arg13[%c1_126, %c0_127, %c0_128], %529 {strides = array<i32>} : memref<2x2x32xf32, #tpu.memory_space<vmem>>, vector<1x2x32xf32>,
    return
  }
}

</mosaic_0001>

<llo_original>
// kernel: sequence_model_forward.1
$region0: #{sequence_model_forward.1}
  #allocation0 [shape = 'u32[]', space=smem, size = 0x4, offset = 0x4, fixed_abs, tag = 'smem constant byte address 0x4 - core index']
  #allocation1 [shape = 'u32[144,128]{1,0:T(1,128)}', space=vmem, size = 0x12000, scoped, tag = 'internal scratch']
  #allocation2 [shape = 'f32[16,32]{1,0:T(8,128)}', space=vmem, size = 0x2000, scoped, tag = 'scratch operand']
  #allocation3 [shape = 'f32[16,32]{1,0:T(8,128)}', space=vmem, size = 0x2000, scoped, tag = 'scratch operand']
  %s0 = inlined_call_operand.vmem [shape: f32[16,16], index: 0, kind: input, shape index: {}]
  %s1 = inlined_call_operand.hbm [shape: f32[16,96], index: 1, kind: input, shape index: {}]
  %s2 = inlined_call_operand.vmem [shape: f32[32,96], index: 2, kind: input, shape index: {}]
  %s3 = inlined_call_operand.vmem [shape: f32[1,96], index: 3, kind: input, shape index: {}]
  %s4 = inlined_call_operand.hbm [shape: f32[1,96], index: 4, kind: input, shape index: {}]
  %s5 = inlined_call_operand.vmem [shape: f32[32,96], index: 5, kind: input, shape index: {}]
  %s6 = inlined_call_operand.vmem [shape: f32[32,96], index: 6, kind: input, shape index: {}]
  %s7 = inlined_call_operand.hbm [shape: f32[1,96], index: 7, kind: input, shape index: {}]
  %s8 = inlined_call_operand.hbm [shape: f32[1,96], index: 8, kind: input, shape index: {}]
  %s9 = inlined_call_operand.vmem [shape: f32[32,16], index: 9, kind: input, shape index: {}]
  %s10 = inlined_call_operand.hbm [shape: f32[1,16], index: 10, kind: input, shape index: {}]
  %s11 = inlined_call_operand.vmem [shape: f32[2,2,32], index: 11, kind: input, shape index: {}]
  %s12 = inlined_call_operand.vmem [shape: f32[16,16], index: 12, kind: output, shape index: {0}]
  %s13 = inlined_call_operand.hbm [shape: f32[2,2,32], index: 13, kind: output, shape index: {1}]
  %14 = xla_tuple %s12, %s13
  %s15 = sld [smem:[#allocation0]]
  $region86: #{sequence_model_forward.1} parent=0
    _
  %s17 = ssub.s32 1, %s15
  %s18 = scalar_select 0, %s17, %s15
  $region1: #{sequence_model_forward.1} parent=0
    #allocation4 [shape = 'u8[8192]{0}', space=vmem, size = 0x2000, scoped, tag = 'input window, operand 1, single buffered']
    #allocation5 [shape = 's32[1]{0}', space=sflag, size = 0x4, scoped, tag = 'scoped memory for sequence_model_forward.1']
    #allocation6 [shape = 's32[1]{0}', space=sflag, size = 0x4, scoped, tag = 'scoped memory for sequence_model_forward.1']
    #allocation7 [shape = 'u8[512]{0}', space=vmem, size = 0x400, scoped, tag = 'input window, operand 4, single buffered']
    #allocation8 [shape = 's32[1]{0}', space=sflag, size = 0x4, scoped, tag = 'scoped memory for sequence_model_forward.1']
    #allocation9 [shape = 'u8[512]{0}', space=vmem, size = 0x400, scoped, tag = 'input window, operand 7, single buffered']
    #allocation10 [shape = 'u8[512]{0}', space=vmem, size = 0x400, scoped, tag = 'input window, operand 8, single buffered']
    #allocation11 [shape = 's32[1]{0}', space=sflag, size = 0x4, scoped, tag = 'scoped memory for sequence_model_forward.1']
    #allocation12 [shape = 'u8[512]{0}', space=vmem, size = 0x400, scoped, tag = 'input window, operand 10, single buffered']
    #allocation13 [shape = 'u8[2048]{0}', space=vmem, size = 0x800, scoped, tag = 'output window, operand 1, single buffered']
    %19 = vsyncpa [#allocation5], 0
    %20 = vsyncpa [#allocation8], 0
    %21 = vsyncpa [#allocation11], 0
    %22 = vsyncpa [#allocation6], 0
    // Predicated region
    $region2: #{sequence_model_forward.1} parent=1 // pred_check
      _
    $region3: #{sequence_model_forward.1} parent=1 // pred_check_branch
      %24 = sbr.rel (0) target = $region5
    $region4: #{sequence_model_forward.1} parent=1 // pred_region
      _
    $region5: #{sequence_model_forward.1} parent=1 // pred_fallthru
      _
    // Predicated region
    $region6: #{sequence_model_forward.1} parent=1 // pred_check
      _
    $region7: #{sequence_model_forward.1} parent=1 // pred_check_branch
      %26 = sbr.rel (0) target = $region9
    $region8: #{sequence_model_forward.1} parent=1 // pred_region
      %s28 = ssub.s32 256, 256
      %29 = vsyncadd [#allocation5], %s28
      %s30 = sshll.u32 [#allocation4], 4
      %s31 = int_to_ptr.vmem [resolvable:$true] %s30
      %36 = dma.hbm_to_vmem [thread:$0]  %s1, 256, %s31, [#allocation5], 128, 128, 8
    $region9: #{sequence_model_forward.1} parent=1 // pred_fallthru
      _
    // Predicated region
    $region10: #{sequence_model_forward.1} parent=1 // pred_check
      _
    $region11: #{sequence_model_forward.1} parent=1 // pred_check_branch
      %38 = sbr.rel (0) target = $region13
    $region12: #{sequence_model_forward.1} parent=1 // pred_region
      _
    $region13: #{sequence_model_forward.1} parent=1 // pred_fallthru
      _
    // Predicated region
    $region14: #{sequence_model_forward.1} parent=1 // pred_check
      _
    $region15: #{sequence_model_forward.1} parent=1 // pred_check_branch
      %40 = sbr.rel (0) target = $region17
    $region16: #{sequence_model_forward.1} parent=1 // pred_region
      _
    $region17: #{sequence_model_forward.1} parent=1 // pred_fallthru
      _
    // Predicated region
    $region18: #{sequence_model_forward.1} parent=1 // pred_check
      _
    $region19: #{sequence_model_forward.1} parent=1 // pred_check_branch
      %42 = sbr.rel (0) target = $region21
    $region20: #{sequence_model_forward.1} parent=1 // pred_region
      %s44 = ssub.s32 16, 16
      %45 = vsyncadd [#allocation8], %s44
      %s47 = sshll.u32 [#allocation7], 4
      %s48 = int_to_ptr.vmem [resolvable:$true] %s47
      %50 = dma.hbm_to_vmem [thread:$0]  %s4, 16, %s48, [#allocation8]
    $region21: #{sequence_model_forward.1} parent=1 // pred_fallthru
      _
    // Predicated region
    $region22: #{sequence_model_forward.1} parent=1 // pred_check
      _
    $region23: #{sequence_model_forward.1} parent=1 // pred_check_branch
      %52 = sbr.rel (0) target = $region25
    $region24: #{sequence_model_forward.1} parent=1 // pred_region
      _
    $region25: #{sequence_model_forward.1} parent=1 // pred_fallthru
      _
    // Predicated region
    $region26: #{sequence_model_forward.1} parent=1 // pred_check
      _
    $region27: #{sequence_model_forward.1} parent=1 // pred_check_branch
      %54 = sbr.rel (0) target = $region29
    $region28: #{sequence_model_forward.1} parent=1 // pred_region
      _
    $region29: #{sequence_model_forward.1} parent=1 // pred_fallthru
      _
    // Predicated region
    $region30: #{sequence_model_forward.1} parent=1 // pred_check
      _
    $region31: #{sequence_model_forward.1} parent=1 // pred_check_branch
      %56 = sbr.rel (0) target = $region33
    $region32: #{sequence_model_forward.1} parent=1 // pred_region
      %s58 = ssub.s32 16, 16
      %59 = vsyncadd [#allocation8], %s58
      %s61 = sshll.u32 [#allocation9], 4
      %s62 = int_to_ptr.vmem [resolvable:$true] %s61
      %64 = dma.hbm_to_vmem [thread:$0]  %s7, 16, %s62, [#allocation8]
    $region33: #{sequence_model_forward.1} parent=1 // pred_fallthru
      _
    // Predicated region
    $region34: #{sequence_model_forward.1} parent=1 // pred_check
      _
    $region35: #{sequence_model_forward.1} parent=1 // pred_check_branch
      %66 = sbr.rel (0) target = $region37
    $region36: #{sequence_model_forward.1} parent=1 // pred_region
      %s68 = ssub.s32 16, 16
      %69 = vsyncadd [#allocation11], %s68
      %s71 = sshll.u32 [#allocation10], 4
      %s72 = int_to_ptr.vmem [resolvable:$true] %s71
      %74 = dma.hbm_to_vmem [thread:$0]  %s8, 16, %s72, [#allocation11]
    $region37: #{sequence_model_forward.1} parent=1 // pred_fallthru
      _
    // Predicated region
    $region38: #{sequence_model_forward.1} parent=1 // pred_check
      _
    $region39: #{sequence_model_forward.1} parent=1 // pred_check_branch
      %76 = sbr.rel (0) target = $region41
    $region40: #{sequence_model_forward.1} parent=1 // pred_region
      _
    $region41: #{sequence_model_forward.1} parent=1 // pred_fallthru
      _
    // Predicated region
    $region42: #{sequence_model_forward.1} parent=1 // pred_check
      _
    $region43: #{sequence_model_forward.1} parent=1 // pred_check_branch
      %78 = sbr.rel (0) target = $region45
    $region44: #{sequence_model_forward.1} parent=1 // pred_region
      %s80 = ssub.s32 16, 16
      %81 = vsyncadd [#allocation11], %s80
      %s83 = sshll.u32 [#allocation12], 4
      %s84 = int_to_ptr.vmem [resolvable:$true] %s83
      %86 = dma.hbm_to_vmem [thread:$0]  %s10, 16, %s84, [#allocation11]
    $region45: #{sequence_model_forward.1} parent=1 // pred_fallthru
      _
    // Predicated region
    $region46: #{sequence_model_forward.1} parent=1 // pred_check
      _
    $region47: #{sequence_model_forward.1} parent=1 // pred_check_branch
      %88 = sbr.rel (0) target = $region49
    $region48: #{sequence_model_forward.1} parent=1 // pred_region
      _
    $region49: #{sequence_model_forward.1} parent=1 // pred_fallthru
      _
    // Predicated region
    $region50: #{sequence_model_forward.1} parent=1 // pred_check
      _
    $region51: #{sequence_model_forward.1} parent=1 // pred_check_branch
      %90 = sbr.rel (0) target = $region53
    $region52: #{sequence_model_forward.1} parent=1 // pred_region
      %91 = dma.done [#allocation5], 256
    $region53: #{sequence_model_forward.1} parent=1 // pred_fallthru
      _
    // Predicated region
    $region54: #{sequence_model_forward.1} parent=1 // pred_check
      _
    $region55: #{sequence_model_forward.1} parent=1 // pred_check_branch
      %93 = sbr.rel (0) target = $region57
    $region56: #{sequence_model_forward.1} parent=1 // pred_region
      %94 = dma.done [#allocation8], 16
    $region57: #{sequence_model_forward.1} parent=1 // pred_fallthru
      _
    // Predicated region
    $region58: #{sequence_model_forward.1} parent=1 // pred_check
      _
    $region59: #{sequence_model_forward.1} parent=1 // pred_check_branch
      %96 = sbr.rel (0) target = $region61
    $region60: #{sequence_model_forward.1} parent=1 // pred_region
      %97 = dma.done [#allocation8], 16
    $region61: #{sequence_model_forward.1} parent=1 // pred_fallthru
      _
    // Predicated region
    $region62: #{sequence_model_forward.1} parent=1 // pred_check
      _
    $region63: #{sequence_model_forward.1} parent=1 // pred_check_branch
      %99 = sbr.rel (0) target = $region65
    $region64: #{sequence_model_forward.1} parent=1 // pred_region
      %100 = dma.done [#allocation11], 16
    $region65: #{sequence_model_forward.1} parent=1 // pred_fallthru
      _
    // Predicated region
    $region66: #{sequence_model_forward.1} parent=1 // pred_check
      _
    $region67: #{sequence_model_forward.1} parent=1 // pred_check_branch
      %102 = sbr.rel (0) target = $region69
    $region68: #{sequence_model_forward.1} parent=1 // pred_region
      %103 = dma.done [#allocation11], 16
    $region69: #{sequence_model_forward.1} parent=1 // pred_fallthru
      _
    %v104 = vld [vmem:[%s0] sm:$0xff]
    %v105 = vld [vmem:[%s0 + $0x8] sm:$0xff]
    %v106 = vld [vmem:[#allocation4] sm:$0xff]
    %v107 = vld [vmem:[#allocation4 + $0x8] sm:$0xff]
    %v108 = vld [vmem:[%s3] sm:$0x1]
    %v110 = vlaneseq
    %v111 = vshrl.u32 %v110, 7
    %v112 = vsub.s32 0, %v111
    %v113 = vrot.slane %v108, %v112
    %vm115 = vcmask 130048
    %v117 = vsel %vm115, %v104, 0
    %v120 = vsel %vm115, %v105, 0
    %122 = vmatprep.subr.mxu0 0.0
    %123 = vmatpush1.msra.mxu0 %v106
    %124 = vmatprep.subr.mxu0 0.0
    %125 = vmatpush1.msra.mxu0 %v107
    %126 = vmatprep.subr.mxu0 0.0
    %127 = vmatpush1.msra.mxu0 0.0
    %128 = vmatprep.subr.mxu0 0.0
    %129 = vmatpush1.msra.mxu0 0.0
    %130 = vmatprep.subr.mxu0 0.0
    %131 = vmatpush1.msra.mxu0 0.0
    %132 = vmatprep.subr.mxu0 0.0
    %133 = vmatpush1.msra.mxu0 0.0
    %134 = vmatprep.subr.mxu0 0.0
    %135 = vmatpush1.msra.mxu0 0.0
    %136 = vmatprep.subr.mxu0 0.0
    %137 = vmatpush1.msra.mxu0 0.0
    %138 = vmatprep.subr.mxu0 0.0
    %139 = vmatpush1.msra.mxu0 0.0
    %140 = vmatprep.subr.mxu0 0.0
    %141 = vmatpush1.msra.mxu0 0.0
    %142 = vmatprep.subr.mxu0 0.0
    %143 = vmatpush1.msra.mxu0 0.0
    %144 = vmatprep.subr.mxu0 0.0
    %145 = vmatpush1.msra.mxu0 0.0
    %146 = vmatprep.subr.mxu0 0.0
    %147 = vmatpush1.msra.mxu0 0.0
    %148 = vmatprep.subr.mxu0 0.0
    %149 = vmatpush1.msra.mxu0 0.0
    %150 = vmatprep.subr.mxu0 0.0
    %151 = vmatpush1.msra.mxu0 0.0
    %152 = vmatprep.subr.mxu0 0.0
    %153 = vmatpush1.msra.mxu0 0.0
    %154 = vmatprep.subr.mxu0 0.0
    %155 = vmatpush1.msra.mxu0 0.0
    %156 = vmatprep.subr.mxu0 0.0
    %157 = vmatpush1.msra.mxu0 0.0
    %158 = vmatprep.subr.mxu0 0.0
    %159 = vmatpush1.msra.mxu0 0.0
    %160 = vmatprep.subr.mxu0 0.0
    %161 = vmatpush1.msra.mxu0 0.0
    %162 = vmatprep.subr.mxu0 0.0
    %163 = vmatpush1.msra.mxu0 0.0
    %164 = vmatprep.subr.mxu0 0.0
    %165 = vmatpush1.msra.mxu0 0.0
    %166 = vmatprep.subr.mxu0 0.0
    %167 = vmatpush1.msra.mxu0 0.0
    %168 = vmatprep.subr.mxu0 0.0
    %169 = vmatpush1.msra.mxu0 0.0
    %170 = vmatprep.subr.mxu0 0.0
    %171 = vmatpush1.msra.mxu0 0.0
    %172 = vmatprep.subr.mxu0 0.0
    %173 = vmatpush1.msra.mxu0 0.0
    %174 = vmatprep.subr.mxu0 0.0
    %175 = vmatpush1.msra.mxu0 0.0
    %176 = vmatprep.subr.mxu0 0.0
    %177 = vmatpush1.msra.mxu0 0.0
    %178 = vmatprep.subr.mxu0 0.0
    %179 = vmatpush1.msra.mxu0 0.0
    %180 = vmatprep.subr.mxu0 0.0
    %181 = vmatpush1.msra.mxu0 0.0
    %182 = vmatprep.subr.mxu0 0.0
    %183 = vmatpush1.msra.mxu0 0.0
    %184 = vmatprep.subr.mxu0 0.0
    %185 = vmatpush1.msra.mxu0 0.0
    %186 = vmatprep.mubr.f32.mxu0 0.0
    %187 = vmatmul.mubr.f32.gmra.mrb[0].mxu0 %v117
    %v188 = vpop.f32.mrb[0].mxu0
    %v189 = vadd.f32 %v113, %v188
    %v190 = vpop.f32.mrb[0].mxu0
    %191 = vmatprep.mubr.f32.mxu0 0.0
    %192 = vmatmul.mubr.f32.gmra.mrb[0].mxu0 %v120
    %v193 = vpop.f32.mrb[0].mxu0
    %v194 = vadd.f32 %v113, %v193
    %v195 = vpop.f32.mrb[0].mxu0
    %196 = vdwg.mxu0
    %v197 = vld [vmem:[%s2] sm:$0xff]
    %v198 = vld [vmem:[%s2 + $0x8] sm:$0xff]
    %v199 = vld [vmem:[%s2 + $0x10] sm:$0xff]
    %v200 = vld [vmem:[%s2 + $0x18] sm:$0xff]
    %v201 = vld [vmem:[#allocation7] sm:$0x1]
    %v202 = vld [vmem:[%s11] sm:$0x3]
    %v204 = vlaneseq
    %v205 = vshrl.u32 %v204, 7
    %v206 = vsub.s32 0, %v205
    %v207 = vrot.slane %v201, %v206
    %vm209 = vcmask 261120
    %v211 = vsel %vm209, %v202, 0
    %213 = vmatprep.subr.mxu0 0.0
    %214 = vmatpush1.msra.mxu0 %v197
    %215 = vmatprep.subr.mxu0 0.0
    %216 = vmatpush1.msra.mxu0 %v198
    %217 = vmatprep.subr.mxu0 0.0
    %218 = vmatpush1.msra.mxu0 %v199
    %219 = vmatprep.subr.mxu0 0.0
    %220 = vmatpush1.msra.mxu0 %v200
    %221 = vmatprep.subr.mxu0 0.0
    %222 = vmatpush1.msra.mxu0 0.0
    %223 = vmatprep.subr.mxu0 0.0
    %224 = vmatpush1.msra.mxu0 0.0
    %225 = vmatprep.subr.mxu0 0.0
    %226 = vmatpush1.msra.mxu0 0.0
    %227 = vmatprep.subr.mxu0 0.0
    %228 = vmatpush1.msra.mxu0 0.0
    %229 = vmatprep.subr.mxu0 0.0
    %230 = vmatpush1.msra.mxu0 0.0
    %231 = vmatprep.subr.mxu0 0.0
    %232 = vmatpush1.msra.mxu0 0.0
    %233 = vmatprep.subr.mxu0 0.0
    %234 = vmatpush1.msra.mxu0 0.0
    %235 = vmatprep.subr.mxu0 0.0
    %236 = vmatpush1.msra.mxu0 0.0
    %237 = vmatprep.subr.mxu0 0.0
    %238 = vmatpush1.msra.mxu0 0.0
    %239 = vmatprep.subr.mxu0 0.0
    %240 = vmatpush1.msra.mxu0 0.0
    %241 = vmatprep.subr.mxu0 0.0
    %242 = vmatpush1.msra.mxu0 0.0
    %243 = vmatprep.subr.mxu0 0.0
    %244 = vmatpush1.msra.mxu0 0.0
    %245 = vmatprep.subr.mxu0 0.0
    %246 = vmatpush1.msra.mxu0 0.0
    %247 = vmatprep.subr.mxu0 0.0
    %248 = vmatpush1.msra.mxu0 0.0
    %249 = vmatprep.subr.mxu0 0.0
    %250 = vmatpush1.msra.mxu0 0.0
    %251 = vmatprep.subr.mxu0 0.0
    %252 = vmatpush1.msra.mxu0 0.0
    %253 = vmatprep.subr.mxu0 0.0
    %254 = vmatpush1.msra.mxu0 0.0
    %255 = vmatprep.subr.mxu0 0.0
    %256 = vmatpush1.msra.mxu0 0.0
    %257 = vmatprep.subr.mxu0 0.0
    %258 = vmatpush1.msra.mxu0 0.0
    %259 = vmatprep.subr.mxu0 0.0
    %260 = vmatpush1.msra.mxu0 0.0
    %261 = vmatprep.subr.mxu0 0.0
    %262 = vmatpush1.msra.mxu0 0.0
    %263 = vmatprep.subr.mxu0 0.0
    %264 = vmatpush1.msra.mxu0 0.0
    %265 = vmatprep.subr.mxu0 0.0
    %266 = vmatpush1.msra.mxu0 0.0
    %267 = vmatprep.subr.mxu0 0.0
    %268 = vmatpush1.msra.mxu0 0.0
    %269 = vmatprep.subr.mxu0 0.0
    %270 = vmatpush1.msra.mxu0 0.0
    %271 = vmatprep.subr.mxu0 0.0
    %272 = vmatpush1.msra.mxu0 0.0
    %273 = vmatprep.subr.mxu0 0.0
    %274 = vmatpush1.msra.mxu0 0.0
    %275 = vmatprep.subr.mxu0 0.0
    %276 = vmatpush1.msra.mxu0 0.0
    %277 = vmatprep.mubr.f32.mxu0 0.0
    %278 = vmatmul.mubr.f32.gmra.mrb[0].mxu0 %v211
    %v279 = vpop.f32.mrb[0].mxu0
    %v280 = vadd.f32 %v207, %v279
    %v281 = vpop.f32.mrb[0].mxu0
    %282 = vdwg.mxu0
    %v283 = vadd.f32 %v189, %v280
    %v284 = vxor.u32 %v283, 2147483648
    %v285 = vmul.f32 %v284, 1.442695
    %v286 = vpow.pop %v285
    %v287 = vadd.f32 %v286, 1.0
    %v288 = vrcp.pop %v287
    %v289 = vmul.f32 1.0, %v288
    %291 = vrot.lane.b32.xlu0 %v280, 64
    %v292 = vpop.permute.xlu0 %291
    %v294 = vmul.f32 %v289, %v292
    %296 = vrot.lane.b32.xlu0 %v294, 64
    %v297 = vpop.permute.xlu0 %296
    %v299 = vadd.f32 %v189, %v297
    %v300 = vtanh.pop %v299
    %v301 = vsub.f32 1.0, %v289
    %303 = vrot.lane.b32.xlu0 %v300, 96
    %v304 = vpop.permute.xlu0 %303
    %v306 = vmul.f32 %v301, %v304
    %307 = vrot.lane.b32.xlu0 %v202, 32
    %v308 = vpop.permute.xlu0 %307
    %v310 = vmul.f32 %v289, %v308
    %v311 = vadd.f32 %v306, %v310
    %313 = vrot.lane.b32.xlu0 %v311, 96
    %v314 = vpop.permute.xlu0 %313
    %vm316 = vcmask 254976
    %317 = vst.msk [vmem:[#allocation2] sm:$0x3] %vm316, %v314
    %v318 = vsel %vm209, %v314, 0
    %320 = vmatprep.subr.mxu0 0.0
    %321 = vmatpush1.msra.mxu0 %v197
    %322 = vmatprep.subr.mxu0 0.0
    %323 = vmatpush1.msra.mxu0 %v198
    %324 = vmatprep.subr.mxu0 0.0
    %325 = vmatpush1.msra.mxu0 %v199
    %326 = vmatprep.subr.mxu0 0.0
    %327 = vmatpush1.msra.mxu0 %v200
    %328 = vmatprep.subr.mxu0 0.0
    %329 = vmatpush1.msra.mxu0 0.0
    %330 = vmatprep.subr.mxu0 0.0
    %331 = vmatpush1.msra.mxu0 0.0
    %332 = vmatprep.subr.mxu0 0.0
    %333 = vmatpush1.msra.mxu0 0.0
    %334 = vmatprep.subr.mxu0 0.0
    %335 = vmatpush1.msra.mxu0 0.0
    %336 = vmatprep.subr.mxu0 0.0
    %337 = vmatpush1.msra.mxu0 0.0
    %338 = vmatprep.subr.mxu0 0.0
    %339 = vmatpush1.msra.mxu0 0.0
    %340 = vmatprep.subr.mxu0 0.0
    %341 = vmatpush1.msra.mxu0 0.0
    %342 = vmatprep.subr.mxu0 0.0
    %343 = vmatpush1.msra.mxu0 0.0
    %344 = vmatprep.subr.mxu0 0.0
    %345 = vmatpush1.msra.mxu0 0.0
    %346 = vmatprep.subr.mxu0 0.0
    %347 = vmatpush1.msra.mxu0 0.0
    %348 = vmatprep.subr.mxu0 0.0
    %349 = vmatpush1.msra.mxu0 0.0
    %350 = vmatprep.subr.mxu0 0.0
    %351 = vmatpush1.msra.mxu0 0.0
    %352 = vmatprep.subr.mxu0 0.0
    %353 = vmatpush1.msra.mxu0 0.0
    %354 = vmatprep.subr.mxu0 0.0
    %355 = vmatpush1.msra.mxu0 0.0
    %356 = vmatprep.subr.mxu0 0.0
    %357 = vmatpush1.msra.mxu0 0.0
    %358 = vmatprep.subr.mxu0 0.0
    %359 = vmatpush1.msra.mxu0 0.0
    %360 = vmatprep.subr.mxu0 0.0
    %361 = vmatpush1.msra.mxu0 0.0
    %362 = vmatprep.subr.mxu0 0.0
    %363 = vmatpush1.msra.mxu0 0.0
    %364 = vmatprep.subr.mxu0 0.0
    %365 = vmatpush1.msra.mxu0 0.0
    %366 = vmatprep.subr.mxu0 0.0
    %367 = vmatpush1.msra.mxu0 0.0
    %368 = vmatprep.subr.mxu0 0.0
    %369 = vmatpush1.msra.mxu0 0.0
    %370 = vmatprep.subr.mxu0 0.0
    %371 = vmatpush1.msra.mxu0 0.0
    %372 = vmatprep.subr.mxu0 0.0
    %373 = vmatpush1.msra.mxu0 0.0
    %374 = vmatprep.subr.mxu0 0.0
    %375 = vmatpush1.msra.mxu0 0.0
    %376 = vmatprep.subr.mxu0 0.0
    %377 = vmatpush1.msra.mxu0 0.0
    %378 = vmatprep.subr.mxu0 0.0
    %379 = vmatpush1.msra.mxu0 0.0
    %380 = vmatprep.subr.mxu0 0.0
    %381 = vmatpush1.msra.mxu0 0.0
    %382 = vmatprep.subr.mxu0 0.0
    %383 = vmatpush1.msra.mxu0 0.0
    %384 = vmatprep.mubr.f32.mxu0 0.0
    %385 = vmatmul.mubr.f32.gmra.mrb[0].mxu0 %v318
    %v386 = vpop.f32.mrb[0].mxu0
    %v387 = vadd.f32 %v207, %v386
    %v388 = vpop.f32.mrb[0].mxu0
    %389 = vdwg.mxu0
    %v391 = vrot.slane %v387, 6
    %v393 = vadd.f32 %v189, %v391
    %v394 = vxor.u32 %v393, 2147483648
    %v395 = vmul.f32 %v394, 1.442695
    %v396 = vpow.pop %v395
    %v397 = vadd.f32 %v396, 1.0
    %v398 = vrcp.pop %v397
    %v399 = vmul.f32 1.0, %v398
    %400 = vrot.lane.b32.xlu0 %v391, 64
    %v401 = vpop.permute.xlu0 %400
    %v403 = vmul.f32 %v399, %v401
    %405 = vrot.lane.b32.xlu0 %v403, 64
    %v406 = vpop.permute.xlu0 %405
    %v408 = vadd.f32 %v189, %v406
    %v409 = vtanh.pop %v408
    %v410 = vsub.f32 1.0, %v399
    %412 = vrot.lane.b32.xlu0 %v409, 96
    %v413 = vpop.permute.xlu0 %412
    %v415 = vmul.f32 %v410, %v413
    %v416 = vrot.slane %v311, 6
    %v418 = vmul.f32 %v399, %v416
    %v419 = vadd.f32 %v415, %v418
    %421 = vrot.lane.b32.xlu0 %v419, 96
    %v422 = vpop.permute.xlu0 %421
    %vm424 = vcmask 257026
    %425 = vst.msk [vmem:[#allocation2] sm:$0xc] %vm424, %v422
    %v426 = vrot.slane %v419, 2
    %427 = vrot.lane.b32.xlu0 %v426, 96
    %v428 = vpop.permute.xlu0 %427
    %v429 = vsel %vm209, %v428, 0
    %431 = vmatprep.subr.mxu0 0.0
    %432 = vmatpush1.msra.mxu0 %v197
    %433 = vmatprep.subr.mxu0 0.0
    %434 = vmatpush1.msra.mxu0 %v198
    %435 = vmatprep.subr.mxu0 0.0
    %436 = vmatpush1.msra.mxu0 %v199
    %437 = vmatprep.subr.mxu0 0.0
    %438 = vmatpush1.msra.mxu0 %v200
    %439 = vmatprep.subr.mxu0 0.0
    %440 = vmatpush1.msra.mxu0 0.0
    %441 = vmatprep.subr.mxu0 0.0
    %442 = vmatpush1.msra.mxu0 0.0
    %443 = vmatprep.subr.mxu0 0.0
    %444 = vmatpush1.msra.mxu0 0.0
    %445 = vmatprep.subr.mxu0 0.0
    %446 = vmatpush1.msra.mxu0 0.0
    %447 = vmatprep.subr.mxu0 0.0
    %448 = vmatpush1.msra.mxu0 0.0
    %449 = vmatprep.subr.mxu0 0.0
    %450 = vmatpush1.msra.mxu0 0.0
    %451 = vmatprep.subr.mxu0 0.0
    %452 = vmatpush1.msra.mxu0 0.0
    %453 = vmatprep.subr.mxu0 0.0
    %454 = vmatpush1.msra.mxu0 0.0
    %455 = vmatprep.subr.mxu0 0.0
    %456 = vmatpush1.msra.mxu0 0.0
    %457 = vmatprep.subr.mxu0 0.0
    %458 = vmatpush1.msra.mxu0 0.0
    %459 = vmatprep.subr.mxu0 0.0
    %460 = vmatpush1.msra.mxu0 0.0
    %461 = vmatprep.subr.mxu0 0.0
    %462 = vmatpush1.msra.mxu0 0.0
    %463 = vmatprep.subr.mxu0 0.0
    %464 = vmatpush1.msra.mxu0 0.0
    %465 = vmatprep.subr.mxu0 0.0
    %466 = vmatpush1.msra.mxu0 0.0
    %467 = vmatprep.subr.mxu0 0.0
    %468 = vmatpush1.msra.mxu0 0.0
    %469 = vmatprep.subr.mxu0 0.0
    %470 = vmatpush1.msra.mxu0 0.0
    %471 = vmatprep.subr.mxu0 0.0
    %472 = vmatpush1.msra.mxu0 0.0
    %473 = vmatprep.subr.mxu0 0.0
    %474 = vmatpush1.msra.mxu0 0.0
    %475 = vmatprep.subr.mxu0 0.0
    %476 = vmatpush1.msra.mxu0 0.0
    %477 = vmatprep.subr.mxu0 0.0
    %478 = vmatpush1.msra.mxu0 0.0
    %479 = vmatprep.subr.mxu0 0.0
    %480 = vmatpush1.msra.mxu0 0.0
    %481 = vmatprep.subr.mxu0 0.0
    %482 = vmatpush1.msra.mxu0 0.0
    %483 = vmatprep.subr.mxu0 0.0
    %484 = vmatpush1.msra.mxu0 0.0
    %485 = vmatprep.subr.mxu0 0.0
    %486 = vmatpush1.msra.mxu0 0.0
    %487 = vmatprep.subr.mxu0 0.0
    %488 = vmatpush1.msra.mxu0 0.0
    %489 = vmatprep.subr.mxu0 0.0
    %490 = vmatpush1.msra.mxu0 0.0
    %491 = vmatprep.subr.mxu0 0.0
    %492 = vmatpush1.msra.mxu0 0.0
    %493 = vmatprep.subr.mxu0 0.0
    %494 = vmatpush1.msra.mxu0 0.0
    %495 = vmatprep.mubr.f32.mxu0 0.0
    %496 = vmatmul.mubr.f32.gmra.mrb[0].mxu0 %v429
    %v497 = vpop.f32.mrb[0].mxu0
    %v498 = vadd.f32 %v207, %v497
    %v499 = vpop.f32.mrb[0].mxu0
    %500 = vdwg.mxu0
    %v502 = vrot.slane %v498, 4
    %v504 = vadd.f32 %v189, %v502
    %v505 = vxor.u32 %v504, 2147483648
    %v506 = vmul.f32 %v505, 1.442695
    %v507 = vpow.pop %v506
    %v508 = vadd.f32 %v507, 1.0
    %v509 = vrcp.pop %v508
    %v510 = vmul.f32 1.0, %v509
    %511 = vrot.lane.b32.xlu0 %v502, 64
    %v512 = vpop.permute.xlu0 %511
    %v514 = vmul.f32 %v510, %v512
    %516 = vrot.lane.b32.xlu0 %v514, 64
    %v517 = vpop.permute.xlu0 %516
    %v519 = vadd.f32 %v189, %v517
    %v520 = vtanh.pop %v519
    %v521 = vsub.f32 1.0, %v510
    %523 = vrot.lane.b32.xlu0 %v520, 96
    %v524 = vpop.permute.xlu0 %523
    %v526 = vmul.f32 %v521, %v524
    %v527 = vrot.slane %v419, 6
    %v529 = vmul.f32 %v510, %v527
    %v530 = vadd.f32 %v526, %v529
    %532 = vrot.lane.b32.xlu0 %v530, 96
    %v533 = vpop.permute.xlu0 %532
    %vm535 = vcmask 259076
    %536 = vst.msk [vmem:[#allocation2] sm:$0x30] %vm535, %v533
    %v537 = vrot.slane %v530, 4
    %538 = vrot.lane.b32.xlu0 %v537, 96
    %v539 = vpop.permute.xlu0 %538
    %v540 = vsel %vm209, %v539, 0
    %542 = vmatprep.subr.mxu0 0.0
    %543 = vmatpush1.msra.mxu0 %v197
    %544 = vmatprep.subr.mxu0 0.0
    %545 = vmatpush1.msra.mxu0 %v198
    %546 = vmatprep.subr.mxu0 0.0
    %547 = vmatpush1.msra.mxu0 %v199
    %548 = vmatprep.subr.mxu0 0.0
    %549 = vmatpush1.msra.mxu0 %v200
    %550 = vmatprep.subr.mxu0 0.0
    %551 = vmatpush1.msra.mxu0 0.0
    %552 = vmatprep.subr.mxu0 0.0
    %553 = vmatpush1.msra.mxu0 0.0
    %554 = vmatprep.subr.mxu0 0.0
    %555 = vmatpush1.msra.mxu0 0.0
    %556 = vmatprep.subr.mxu0 0.0
    %557 = vmatpush1.msra.mxu0 0.0
    %558 = vmatprep.subr.mxu0 0.0
    %559 = vmatpush1.msra.mxu0 0.0
    %560 = vmatprep.subr.mxu0 0.0
    %561 = vmatpush1.msra.mxu0 0.0
    %562 = vmatprep.subr.mxu0 0.0
    %563 = vmatpush1.msra.mxu0 0.0
    %564 = vmatprep.subr.mxu0 0.0
    %565 = vmatpush1.msra.mxu0 0.0
    %566 = vmatprep.subr.mxu0 0.0
    %567 = vmatpush1.msra.mxu0 0.0
    %568 = vmatprep.subr.mxu0 0.0
    %569 = vmatpush1.msra.mxu0 0.0
    %570 = vmatprep.subr.mxu0 0.0
    %571 = vmatpush1.msra.mxu0 0.0
    %572 = vmatprep.subr.mxu0 0.0
    %573 = vmatpush1.msra.mxu0 0.0
    %574 = vmatprep.subr.mxu0 0.0
    %575 = vmatpush1.msra.mxu0 0.0
    %576 = vmatprep.subr.mxu0 0.0
    %577 = vmatpush1.msra.mxu0 0.0
    %578 = vmatprep.subr.mxu0 0.0
    %579 = vmatpush1.msra.mxu0 0.0
    %580 = vmatprep.subr.mxu0 0.0
    %581 = vmatpush1.msra.mxu0 0.0
    %582 = vmatprep.subr.mxu0 0.0
    %583 = vmatpush1.msra.mxu0 0.0
    %584 = vmatprep.subr.mxu0 0.0
    %585 = vmatpush1.msra.mxu0 0.0
    %586 = vmatprep.subr.mxu0 0.0
    %587 = vmatpush1.msra.mxu0 0.0
    %588 = vmatprep.subr.mxu0 0.0
    %589 = vmatpush1.msra.mxu0 0.0
    %590 = vmatprep.subr.mxu0 0.0
    %591 = vmatpush1.msra.mxu0 0.0
    %592 = vmatprep.subr.mxu0 0.0
    %593 = vmatpush1.msra.mxu0 0.0
    %594 = vmatprep.subr.mxu0 0.0
    %595 = vmatpush1.msra.mxu0 0.0
    %596 = vmatprep.subr.mxu0 0.0
    %597 = vmatpush1.msra.mxu0 0.0
    %598 = vmatprep.subr.mxu0 0.0
    %599 = vmatpush1.msra.mxu0 0.0
    %600 = vmatprep.subr.mxu0 0.0
    %601 = vmatpush1.msra.mxu0 0.0
    %602 = vmatprep.subr.mxu0 0.0
    %603 = vmatpush1.msra.mxu0 0.0
    %604 = vmatprep.subr.mxu0 0.0
    %605 = vmatpush1.msra.mxu0 0.0
    %606 = vmatprep.mubr.f32.mxu0 0.0
    %607 = vmatmul.mubr.f32.gmra.mrb[0].mxu0 %v540
    %v608 = vpop.f32.mrb[0].mxu0
    %v609 = vadd.f32 %v207, %v608
    %v610 = vpop.f32.mrb[0].mxu0
    %611 = vdwg.mxu0
    %v613 = vrot.slane %v609, 2
    %v615 = vadd.f32 %v189, %v613
    %v616 = vxor.u32 %v615, 2147483648
    %v617 = vmul.f32 %v616, 1.442695
    %v618 = vpow.pop %v617
    %v619 = vadd.f32 %v618, 1.0
    %v620 = vrcp.pop %v619
    %v621 = vmul.f32 1.0, %v620
    %622 = vrot.lane.b32.xlu0 %v613, 64
    %v623 = vpop.permute.xlu0 %622
    %v625 = vmul.f32 %v621, %v623
    %627 = vrot.lane.b32.xlu0 %v625, 64
    %v628 = vpop.permute.xlu0 %627
    %v630 = vadd.f32 %v189, %v628
    %v631 = vtanh.pop %v630
    %v632 = vsub.f32 1.0, %v621
    %634 = vrot.lane.b32.xlu0 %v631, 96
    %v635 = vpop.permute.xlu0 %634
    %v637 = vmul.f32 %v632, %v635
    %v638 = vrot.slane %v530, 6
    %v640 = vmul.f32 %v621, %v638
    %v641 = vadd.f32 %v637, %v640
    %643 = vrot.lane.b32.xlu0 %v641, 96
    %v644 = vpop.permute.xlu0 %643
    %vm646 = vcmask 261126
    %647 = vst.msk [vmem:[#allocation2] sm:$0xc0] %vm646, %v644
    %v648 = vrot.slane %v641, 6
    %649 = vrot.lane.b32.xlu0 %v648, 96
    %v650 = vpop.permute.xlu0 %649
    %v651 = vsel %vm209, %v650, 0
    %653 = vmatprep.subr.mxu0 0.0
    %654 = vmatpush1.msra.mxu0 %v197
    %655 = vmatprep.subr.mxu0 0.0
    %656 = vmatpush1.msra.mxu0 %v198
    %657 = vmatprep.subr.mxu0 0.0
    %658 = vmatpush1.msra.mxu0 %v199
    %659 = vmatprep.subr.mxu0 0.0
    %660 = vmatpush1.msra.mxu0 %v200
    %661 = vmatprep.subr.mxu0 0.0
    %662 = vmatpush1.msra.mxu0 0.0
    %663 = vmatprep.subr.mxu0 0.0
    %664 = vmatpush1.msra.mxu0 0.0
    %665 = vmatprep.subr.mxu0 0.0
    %666 = vmatpush1.msra.mxu0 0.0
    %667 = vmatprep.subr.mxu0 0.0
    %668 = vmatpush1.msra.mxu0 0.0
    %669 = vmatprep.subr.mxu0 0.0
    %670 = vmatpush1.msra.mxu0 0.0
    %671 = vmatprep.subr.mxu0 0.0
    %672 = vmatpush1.msra.mxu0 0.0
    %673 = vmatprep.subr.mxu0 0.0
    %674 = vmatpush1.msra.mxu0 0.0
    %675 = vmatprep.subr.mxu0 0.0
    %676 = vmatpush1.msra.mxu0 0.0
    %677 = vmatprep.subr.mxu0 0.0
    %678 = vmatpush1.msra.mxu0 0.0
    %679 = vmatprep.subr.mxu0 0.0
    %680 = vmatpush1.msra.mxu0 0.0
    %681 = vmatprep.subr.mxu0 0.0
    %682 = vmatpush1.msra.mxu0 0.0
    %683 = vmatprep.subr.mxu0 0.0
    %684 = vmatpush1.msra.mxu0 0.0
    %685 = vmatprep.subr.mxu0 0.0
    %686 = vmatpush1.msra.mxu0 0.0
    %687 = vmatprep.subr.mxu0 0.0
    %688 = vmatpush1.msra.mxu0 0.0
    %689 = vmatprep.subr.mxu0 0.0
    %690 = vmatpush1.msra.mxu0 0.0
    %691 = vmatprep.subr.mxu0 0.0
    %692 = vmatpush1.msra.mxu0 0.0
    %693 = vmatprep.subr.mxu0 0.0
    %694 = vmatpush1.msra.mxu0 0.0
    %695 = vmatprep.subr.mxu0 0.0
    %696 = vmatpush1.msra.mxu0 0.0
    %697 = vmatprep.subr.mxu0 0.0
    %698 = vmatpush1.msra.mxu0 0.0
    %699 = vmatprep.subr.mxu0 0.0
    %700 = vmatpush1.msra.mxu0 0.0
    %701 = vmatprep.subr.mxu0 0.0
    %702 = vmatpush1.msra.mxu0 0.0
    %703 = vmatprep.subr.mxu0 0.0
    %704 = vmatpush1.msra.mxu0 0.0
    %705 = vmatprep.subr.mxu0 0.0
    %706 = vmatpush1.msra.mxu0 0.0
    %707 = vmatprep.subr.mxu0 0.0
    %708 = vmatpush1.msra.mxu0 0.0
    %709 = vmatprep.subr.mxu0 0.0
    %710 = vmatpush1.msra.mxu0 0.0
    %711 = vmatprep.subr.mxu0 0.0
    %712 = vmatpush1.msra.mxu0 0.0
    %713 = vmatprep.subr.mxu0 0.0
    %714 = vmatpush1.msra.mxu0 0.0
    %715 = vmatprep.subr.mxu0 0.0
    %716 = vmatpush1.msra.mxu0 0.0
    %717 = vmatprep.mubr.f32.mxu0 0.0
    %718 = vmatmul.mubr.f32.gmra.mrb[0].mxu0 %v651
    %v719 = vpop.f32.mrb[0].mxu0
    %v720 = vadd.f32 %v207, %v719
    %v721 = vpop.f32.mrb[0].mxu0
    %722 = vdwg.mxu0
    %v723 = vadd.f32 %v194, %v720
    %v724 = vxor.u32 %v723, 2147483648
    %v725 = vmul.f32 %v724, 1.442695
    %v726 = vpow.pop %v725
    %v727 = vadd.f32 %v726, 1.0
    %v728 = vrcp.pop %v727
    %v729 = vmul.f32 1.0, %v728
    %731 = vrot.lane.b32.xlu0 %v720, 64
    %v732 = vpop.permute.xlu0 %731
    %v734 = vmul.f32 %v729, %v732
    %736 = vrot.lane.b32.xlu0 %v734, 64
    %v737 = vpop.permute.xlu0 %736
    %v739 = vadd.f32 %v194, %v737
    %v740 = vtanh.pop %v739
    %v741 = vsub.f32 1.0, %v729
    %743 = vrot.lane.b32.xlu0 %v740, 96
    %v744 = vpop.permute.xlu0 %743
    %v746 = vmul.f32 %v741, %v744
    %v748 = vmul.f32 %v729, %v648
    %v749 = vadd.f32 %v746, %v748
    %751 = vrot.lane.b32.xlu0 %v749, 96
    %v752 = vpop.permute.xlu0 %751
    %754 = vst.msk [vmem:[#allocation2 + $0x8] sm:$0x3] %vm316, %v752
    %v755 = vsel %vm209, %v752, 0
    %757 = vmatprep.subr.mxu0 0.0
    %758 = vmatpush1.msra.mxu0 %v197
    %759 = vmatprep.subr.mxu0 0.0
    %760 = vmatpush1.msra.mxu0 %v198
    %761 = vmatprep.subr.mxu0 0.0
    %762 = vmatpush1.msra.mxu0 %v199
    %763 = vmatprep.subr.mxu0 0.0
    %764 = vmatpush1.msra.mxu0 %v200
    %765 = vmatprep.subr.mxu0 0.0
    %766 = vmatpush1.msra.mxu0 0.0
    %767 = vmatprep.subr.mxu0 0.0
    %768 = vmatpush1.msra.mxu0 0.0
    %769 = vmatprep.subr.mxu0 0.0
    %770 = vmatpush1.msra.mxu0 0.0
    %771 = vmatprep.subr.mxu0 0.0
    %772 = vmatpush1.msra.mxu0 0.0
    %773 = vmatprep.subr.mxu0 0.0
    %774 = vmatpush1.msra.mxu0 0.0
    %775 = vmatprep.subr.mxu0 0.0
    %776 = vmatpush1.msra.mxu0 0.0
    %777 = vmatprep.subr.mxu0 0.0
    %778 = vmatpush1.msra.mxu0 0.0
    %779 = vmatprep.subr.mxu0 0.0
    %780 = vmatpush1.msra.mxu0 0.0
    %781 = vmatprep.subr.mxu0 0.0
    %782 = vmatpush1.msra.mxu0 0.0
    %783 = vmatprep.subr.mxu0 0.0
    %784 = vmatpush1.msra.mxu0 0.0
    %785 = vmatprep.subr.mxu0 0.0
    %786 = vmatpush1.msra.mxu0 0.0
    %787 = vmatprep.subr.mxu0 0.0
    %788 = vmatpush1.msra.mxu0 0.0
    %789 = vmatprep.subr.mxu0 0.0
    %790 = vmatpush1.msra.mxu0 0.0
    %791 = vmatprep.subr.mxu0 0.0
    %792 = vmatpush1.msra.mxu0 0.0
    %793 = vmatprep.subr.mxu0 0.0
    %794 = vmatpush1.msra.mxu0 0.0
    %795 = vmatprep.subr.mxu0 0.0
    %796 = vmatpush1.msra.mxu0 0.0
    %797 = vmatprep.subr.mxu0 0.0
    %798 = vmatpush1.msra.mxu0 0.0
    %799 = vmatprep.subr.mxu0 0.0
    %800 = vmatpush1.msra.mxu0 0.0
    %801 = vmatprep.subr.mxu0 0.0
    %802 = vmatpush1.msra.mxu0 0.0
    %803 = vmatprep.subr.mxu0 0.0
    %804 = vmatpush1.msra.mxu0 0.0
    %805 = vmatprep.subr.mxu0 0.0
    %806 = vmatpush1.msra.mxu0 0.0
    %807 = vmatprep.subr.mxu0 0.0
    %808 = vmatpush1.msra.mxu0 0.0
    %809 = vmatprep.subr.mxu0 0.0
    %810 = vmatpush1.msra.mxu0 0.0
    %811 = vmatprep.subr.mxu0 0.0
    %812 = vmatpush1.msra.mxu0 0.0
    %813 = vmatprep.subr.mxu0 0.0
    %814 = vmatpush1.msra.mxu0 0.0
    %815 = vmatprep.subr.mxu0 0.0
    %816 = vmatpush1.msra.mxu0 0.0
    %817 = vmatprep.subr.mxu0 0.0
    %818 = vmatpush1.msra.mxu0 0.0
    %819 = vmatprep.subr.mxu0 0.0
    %820 = vmatpush1.msra.mxu0 0.0
    %821 = vmatprep.mubr.f32.mxu0 0.0
    %822 = vmatmul.mubr.f32.gmra.mrb[0].mxu0 %v755
    %v823 = vpop.f32.mrb[0].mxu0
    %v824 = vadd.f32 %v207, %v823
    %v825 = vpop.f32.mrb[0].mxu0
    %826 = vdwg.mxu0
    %v828 = vrot.slane %v824, 6
    %v830 = vadd.f32 %v194, %v828
    %v831 = vxor.u32 %v830, 2147483648
    %v832 = vmul.f32 %v831, 1.442695
    %v833 = vpow.pop %v832
    %v834 = vadd.f32 %v833, 1.0
    %v835 = vrcp.pop %v834
    %v836 = vmul.f32 1.0, %v835
    %837 = vrot.lane.b32.xlu0 %v828, 64
    %v838 = vpop.permute.xlu0 %837
    %v840 = vmul.f32 %v836, %v838
    %842 = vrot.lane.b32.xlu0 %v840, 64
    %v843 = vpop.permute.xlu0 %842
    %v845 = vadd.f32 %v194, %v843
    %v846 = vtanh.pop %v845
    %v847 = vsub.f32 1.0, %v836
    %849 = vrot.lane.b32.xlu0 %v846, 96
    %v850 = vpop.permute.xlu0 %849
    %v852 = vmul.f32 %v847, %v850
    %v853 = vrot.slane %v749, 6
    %v855 = vmul.f32 %v836, %v853
    %v856 = vadd.f32 %v852, %v855
    %858 = vrot.lane.b32.xlu0 %v856, 96
    %v859 = vpop.permute.xlu0 %858
    %861 = vst.msk [vmem:[#allocation2 + $0x8] sm:$0xc] %vm424, %v859
    %v862 = vrot.slane %v856, 2
    %863 = vrot.lane.b32.xlu0 %v862, 96
    %v864 = vpop.permute.xlu0 %863
    %v865 = vsel %vm209, %v864, 0
    %867 = vmatprep.subr.mxu0 0.0
    %868 = vmatpush1.msra.mxu0 %v197
    %869 = vmatprep.subr.mxu0 0.0
    %870 = vmatpush1.msra.mxu0 %v198
    %871 = vmatprep.subr.mxu0 0.0
    %872 = vmatpush1.msra.mxu0 %v199
    %873 = vmatprep.subr.mxu0 0.0
    %874 = vmatpush1.msra.mxu0 %v200
    %875 = vmatprep.subr.mxu0 0.0
    %876 = vmatpush1.msra.mxu0 0.0
    %877 = vmatprep.subr.mxu0 0.0
    %878 = vmatpush1.msra.mxu0 0.0
    %879 = vmatprep.subr.mxu0 0.0
    %880 = vmatpush1.msra.mxu0 0.0
    %881 = vmatprep.subr.mxu0 0.0
    %882 = vmatpush1.msra.mxu0 0.0
    %883 = vmatprep.subr.mxu0 0.0
    %884 = vmatpush1.msra.mxu0 0.0
    %885 = vmatprep.subr.mxu0 0.0
    %886 = vmatpush1.msra.mxu0 0.0
    %887 = vmatprep.subr.mxu0 0.0
    %888 = vmatpush1.msra.mxu0 0.0
    %889 = vmatprep.subr.mxu0 0.0
    %890 = vmatpush1.msra.mxu0 0.0
    %891 = vmatprep.subr.mxu0 0.0
    %892 = vmatpush1.msra.mxu0 0.0
    %893 = vmatprep.subr.mxu0 0.0
    %894 = vmatpush1.msra.mxu0 0.0
    %895 = vmatprep.subr.mxu0 0.0
    %896 = vmatpush1.msra.mxu0 0.0
    %897 = vmatprep.subr.mxu0 0.0
    %898 = vmatpush1.msra.mxu0 0.0
    %899 = vmatprep.subr.mxu0 0.0
    %900 = vmatpush1.msra.mxu0 0.0
    %901 = vmatprep.subr.mxu0 0.0
    %902 = vmatpush1.msra.mxu0 0.0
    %903 = vmatprep.subr.mxu0 0.0
    %904 = vmatpush1.msra.mxu0 0.0
    %905 = vmatprep.subr.mxu0 0.0
    %906 = vmatpush1.msra.mxu0 0.0
    %907 = vmatprep.subr.mxu0 0.0
    %908 = vmatpush1.msra.mxu0 0.0
    %909 = vmatprep.subr.mxu0 0.0
    %910 = vmatpush1.msra.mxu0 0.0
    %911 = vmatprep.subr.mxu0 0.0
    %912 = vmatpush1.msra.mxu0 0.0
    %913 = vmatprep.subr.mxu0 0.0
    %914 = vmatpush1.msra.mxu0 0.0
    %915 = vmatprep.subr.mxu0 0.0
    %916 = vmatpush1.msra.mxu0 0.0
    %917 = vmatprep.subr.mxu0 0.0
    %918 = vmatpush1.msra.mxu0 0.0
    %919 = vmatprep.subr.mxu0 0.0
    %920 = vmatpush1.msra.mxu0 0.0
    %921 = vmatprep.subr.mxu0 0.0
    %922 = vmatpush1.msra.mxu0 0.0
    %923 = vmatprep.subr.mxu0 0.0
    %924 = vmatpush1.msra.mxu0 0.0
    %925 = vmatprep.subr.mxu0 0.0
    %926 = vmatpush1.msra.mxu0 0.0
    %927 = vmatprep.subr.mxu0 0.0
    %928 = vmatpush1.msra.mxu0 0.0
    %929 = vmatprep.subr.mxu0 0.0
    %930 = vmatpush1.msra.mxu0 0.0
    %931 = vmatprep.mubr.f32.mxu0 0.0
    %932 = vmatmul.mubr.f32.gmra.mrb[0].mxu0 %v865
    %v933 = vpop.f32.mrb[0].mxu0
    %v934 = vadd.f32 %v207, %v933
    %v935 = vpop.f32.mrb[0].mxu0
    %936 = vdwg.mxu0
    %v938 = vrot.slane %v934, 4
    %v940 = vadd.f32 %v194, %v938
    %v941 = vxor.u32 %v940, 2147483648
    %v942 = vmul.f32 %v941, 1.442695
    %v943 = vpow.pop %v942
    %v944 = vadd.f32 %v943, 1.0
    %v945 = vrcp.pop %v944
    %v946 = vmul.f32 1.0, %v945
    %947 = vrot.lane.b32.xlu0 %v938, 64
    %v948 = vpop.permute.xlu0 %947
    %v950 = vmul.f32 %v946, %v948
    %952 = vrot.lane.b32.xlu0 %v950, 64
    %v953 = vpop.permute.xlu0 %952
    %v955 = vadd.f32 %v194, %v953
    %v956 = vtanh.pop %v955
    %v957 = vsub.f32 1.0, %v946
    %959 = vrot.lane.b32.xlu0 %v956, 96
    %v960 = vpop.permute.xlu0 %959
    %v962 = vmul.f32 %v957, %v960
    %v963 = vrot.slane %v856, 6
    %v965 = vmul.f32 %v946, %v963
    %v966 = vadd.f32 %v962, %v965
    %968 = vrot.lane.b32.xlu0 %v966, 96
    %v969 = vpop.permute.xlu0 %968
    %971 = vst.msk [vmem:[#allocation2 + $0x8] sm:$0x30] %vm535, %v969
    %v972 = vrot.slane %v966, 4
    %973 = vrot.lane.b32.xlu0 %v972, 96
    %v974 = vpop.permute.xlu0 %973
    %v975 = vsel %vm209, %v974, 0
    %977 = vmatprep.subr.mxu0 0.0
    %978 = vmatpush1.msra.mxu0 %v197
    %979 = vmatprep.subr.mxu0 0.0
    %980 = vmatpush1.msra.mxu0 %v198
    %981 = vmatprep.subr.mxu0 0.0
    %982 = vmatpush1.msra.mxu0 %v199
    %983 = vmatprep.subr.mxu0 0.0
    %984 = vmatpush1.msra.mxu0 %v200
    %985 = vmatprep.subr.mxu0 0.0
    %986 = vmatpush1.msra.mxu0 0.0
    %987 = vmatprep.subr.mxu0 0.0
    %988 = vmatpush1.msra.mxu0 0.0
    %989 = vmatprep.subr.mxu0 0.0
    %990 = vmatpush1.msra.mxu0 0.0
    %991 = vmatprep.subr.mxu0 0.0
    %992 = vmatpush1.msra.mxu0 0.0
    %993 = vmatprep.subr.mxu0 0.0
    %994 = vmatpush1.msra.mxu0 0.0
    %995 = vmatprep.subr.mxu0 0.0
    %996 = vmatpush1.msra.mxu0 0.0
    %997 = vmatprep.subr.mxu0 0.0
    %998 = vmatpush1.msra.mxu0 0.0
    %999 = vmatprep.subr.mxu0 0.0
    %1000 = vmatpush1.msra.mxu0 0.0
    %1001 = vmatprep.subr.mxu0 0.0
    %1002 = vmatpush1.msra.mxu0 0.0
    %1003 = vmatprep.subr.mxu0 0.0
    %1004 = vmatpush1.msra.mxu0 0.0
    %1005 = vmatprep.subr.mxu0 0.0
    %1006 = vmatpush1.msra.mxu0 0.0
    %1007 = vmatprep.subr.mxu0 0.0
    %1008 = vmatpush1.msra.mxu0 0.0
    %1009 = vmatprep.subr.mxu0 0.0
    %1010 = vmatpush1.msra.mxu0 0.0
    %1011 = vmatprep.subr.mxu0 0.0
    %1012 = vmatpush1.msra.mxu0 0.0
    %1013 = vmatprep.subr.mxu0 0.0
    %1014 = vmatpush1.msra.mxu0 0.0
    %1015 = vmatprep.subr.mxu0 0.0
    %1016 = vmatpush1.msra.mxu0 0.0
    %1017 = vmatprep.subr.mxu0 0.0
    %1018 = vmatpush1.msra.mxu0 0.0
    %1019 = vmatprep.subr.mxu0 0.0
    %1020 = vmatpush1.msra.mxu0 0.0
    %1021 = vmatprep.subr.mxu0 0.0
    %1022 = vmatpush1.msra.mxu0 0.0
    %1023 = vmatprep.subr.mxu0 0.0
    %1024 = vmatpush1.msra.mxu0 0.0
    %1025 = vmatprep.subr.mxu0 0.0
    %1026 = vmatpush1.msra.mxu0 0.0
    %1027 = vmatprep.subr.mxu0 0.0
    %1028 = vmatpush1.msra.mxu0 0.0
    %1029 = vmatprep.subr.mxu0 0.0
    %1030 = vmatpush1.msra.mxu0 0.0
    %1031 = vmatprep.subr.mxu0 0.0
    %1032 = vmatpush1.msra.mxu0 0.0
    %1033 = vmatprep.subr.mxu0 0.0
    %1034 = vmatpush1.msra.mxu0 0.0
    %1035 = vmatprep.subr.mxu0 0.0
    %1036 = vmatpush1.msra.mxu0 0.0
    %1037 = vmatprep.subr.mxu0 0.0
    %1038 = vmatpush1.msra.mxu0 0.0
    %1039 = vmatprep.subr.mxu0 0.0
    %1040 = vmatpush1.msra.mxu0 0.0
    %1041 = vmatprep.mubr.f32.mxu0 0.0
    %1042 = vmatmul.mubr.f32.gmra.mrb[0].mxu0 %v975
    %v1043 = vpop.f32.mrb[0].mxu0
    %v1044 = vadd.f32 %v207, %v1043
    %v1045 = vpop.f32.mrb[0].mxu0
    %1046 = vdwg.mxu0
    %v1048 = vrot.slane %v1044, 2
    %v1050 = vadd.f32 %v194, %v1048
    %v1051 = vxor.u32 %v1050, 2147483648
    %v1052 = vmul.f32 %v1051, 1.442695
    %v1053 = vpow.pop %v1052
    %v1054 = vadd.f32 %v1053, 1.0
    %v1055 = vrcp.pop %v1054
    %v1056 = vmul.f32 1.0, %v1055
    %1057 = vrot.lane.b32.xlu0 %v1048, 64
    %v1058 = vpop.permute.xlu0 %1057
    %v1060 = vmul.f32 %v1056, %v1058
    %1062 = vrot.lane.b32.xlu0 %v1060, 64
    %v1063 = vpop.permute.xlu0 %1062
    %v1065 = vadd.f32 %v194, %v1063
    %v1066 = vtanh.pop %v1065
    %v1067 = vsub.f32 1.0, %v1056
    %1069 = vrot.lane.b32.xlu0 %v1066, 96
    %v1070 = vpop.permute.xlu0 %1069
    %v1072 = vmul.f32 %v1067, %v1070
    %v1073 = vrot.slane %v966, 6
    %v1075 = vmul.f32 %v1056, %v1073
    %v1076 = vadd.f32 %v1072, %v1075
    %1078 = vrot.lane.b32.xlu0 %v1076, 96
    %v1079 = vpop.permute.xlu0 %1078
    %1081 = vst.msk [vmem:[#allocation2 + $0x8] sm:$0xc0] %vm646, %v1079
    %v1082 = vld [vmem:[#allocation2] sm:$0xff]
    %v1083 = vld [vmem:[#allocation2 + $0x8] sm:$0xff]
    %v1084 = vld [vmem:[%s5] sm:$0xff]
    %v1085 = vld [vmem:[%s5 + $0x8] sm:$0xff]
    %v1086 = vld [vmem:[%s5 + $0x10] sm:$0xff]
    %v1087 = vld [vmem:[%s5 + $0x18] sm:$0xff]
    %v1088 = vld [vmem:[#allocation9] sm:$0x1]
    %v1090 = vlaneseq
    %v1091 = vshrl.u32 %v1090, 7
    %v1092 = vsub.s32 0, %v1091
    %v1093 = vrot.slane %v1088, %v1092
    %v1096 = vsel %vm209, %v1082, 0
    %v1099 = vsel %vm209, %v1083, 0
    %1101 = vmatprep.subr.mxu0 0.0
    %1102 = vmatpush1.msra.mxu0 %v1084
    %1103 = vmatprep.subr.mxu0 0.0
    %1104 = vmatpush1.msra.mxu0 %v1085
    %1105 = vmatprep.subr.mxu0 0.0
    %1106 = vmatpush1.msra.mxu0 %v1086
    %1107 = vmatprep.subr.mxu0 0.0
    %1108 = vmatpush1.msra.mxu0 %v1087
    %1109 = vmatprep.subr.mxu0 0.0
    %1110 = vmatpush1.msra.mxu0 0.0
    %1111 = vmatprep.subr.mxu0 0.0
    %1112 = vmatpush1.msra.mxu0 0.0
    %1113 = vmatprep.subr.mxu0 0.0
    %1114 = vmatpush1.msra.mxu0 0.0
    %1115 = vmatprep.subr.mxu0 0.0
    %1116 = vmatpush1.msra.mxu0 0.0
    %1117 = vmatprep.subr.mxu0 0.0
    %1118 = vmatpush1.msra.mxu0 0.0
    %1119 = vmatprep.subr.mxu0 0.0
    %1120 = vmatpush1.msra.mxu0 0.0
    %1121 = vmatprep.subr.mxu0 0.0
    %1122 = vmatpush1.msra.mxu0 0.0
    %1123 = vmatprep.subr.mxu0 0.0
    %1124 = vmatpush1.msra.mxu0 0.0
    %1125 = vmatprep.subr.mxu0 0.0
    %1126 = vmatpush1.msra.mxu0 0.0
    %1127 = vmatprep.subr.mxu0 0.0
    %1128 = vmatpush1.msra.mxu0 0.0
    %1129 = vmatprep.subr.mxu0 0.0
    %1130 = vmatpush1.msra.mxu0 0.0
    %1131 = vmatprep.subr.mxu0 0.0
    %1132 = vmatpush1.msra.mxu0 0.0
    %1133 = vmatprep.subr.mxu0 0.0
    %1134 = vmatpush1.msra.mxu0 0.0
    %1135 = vmatprep.subr.mxu0 0.0
    %1136 = vmatpush1.msra.mxu0 0.0
    %1137 = vmatprep.subr.mxu0 0.0
    %1138 = vmatpush1.msra.mxu0 0.0
    %1139 = vmatprep.subr.mxu0 0.0
    %1140 = vmatpush1.msra.mxu0 0.0
    %1141 = vmatprep.subr.mxu0 0.0
    %1142 = vmatpush1.msra.mxu0 0.0
    %1143 = vmatprep.subr.mxu0 0.0
    %1144 = vmatpush1.msra.mxu0 0.0
    %1145 = vmatprep.subr.mxu0 0.0
    %1146 = vmatpush1.msra.mxu0 0.0
    %1147 = vmatprep.subr.mxu0 0.0
    %1148 = vmatpush1.msra.mxu0 0.0
    %1149 = vmatprep.subr.mxu0 0.0
    %1150 = vmatpush1.msra.mxu0 0.0
    %1151 = vmatprep.subr.mxu0 0.0
    %1152 = vmatpush1.msra.mxu0 0.0
    %1153 = vmatprep.subr.mxu0 0.0
    %1154 = vmatpush1.msra.mxu0 0.0
    %1155 = vmatprep.subr.mxu0 0.0
    %1156 = vmatpush1.msra.mxu0 0.0
    %1157 = vmatprep.subr.mxu0 0.0
    %1158 = vmatpush1.msra.mxu0 0.0
    %1159 = vmatprep.subr.mxu0 0.0
    %1160 = vmatpush1.msra.mxu0 0.0
    %1161 = vmatprep.subr.mxu0 0.0
    %1162 = vmatpush1.msra.mxu0 0.0
    %1163 = vmatprep.subr.mxu0 0.0
    %1164 = vmatpush1.msra.mxu0 0.0
    %1165 = vmatprep.mubr.f32.mxu0 0.0
    %1166 = vmatmul.mubr.f32.gmra.mrb[0].mxu0 %v1096
    %v1167 = vpop.f32.mrb[0].mxu0
    %v1168 = vadd.f32 %v1093, %v1167
    %v1169 = vpop.f32.mrb[0].mxu0
    %1170 = vmatprep.mubr.f32.mxu0 0.0
    %1171 = vmatmul.mubr.f32.gmra.mrb[0].mxu0 %v1099
    %v1172 = vpop.f32.mrb[0].mxu0
    %v1173 = vadd.f32 %v1093, %v1172
    %v1174 = vpop.f32.mrb[0].mxu0
    %1175 = vdwg.mxu0
    %v1176 = vld [vmem:[%s6] sm:$0xff]
    %v1177 = vld [vmem:[%s6 + $0x8] sm:$0xff]
    %v1178 = vld [vmem:[%s6 + $0x10] sm:$0xff]
    %v1179 = vld [vmem:[%s6 + $0x18] sm:$0xff]
    %v1180 = vld [vmem:[#allocation10] sm:$0x1]
    %s1181 = scalar_lea.vmem %s11, 2
    %v1182 = vld [vmem:[%s1181] sm:$0x3]
    %v1184 = vlaneseq
    %v1185 = vshrl.u32 %v1184, 7
    %v1186 = vsub.s32 0, %v1185
    %v1187 = vrot.slane %v1180, %v1186
    %v1190 = vsel %vm209, %v1182, 0
    %1192 = vmatprep.subr.mxu0 0.0
    %1193 = vmatpush1.msra.mxu0 %v1176
    %1194 = vmatprep.subr.mxu0 0.0
    %1195 = vmatpush1.msra.mxu0 %v1177
    %1196 = vmatprep.subr.mxu0 0.0
    %1197 = vmatpush1.msra.mxu0 %v1178
    %1198 = vmatprep.subr.mxu0 0.0
    %1199 = vmatpush1.msra.mxu0 %v1179
    %1200 = vmatprep.subr.mxu0 0.0
    %1201 = vmatpush1.msra.mxu0 0.0
    %1202 = vmatprep.subr.mxu0 0.0
    %1203 = vmatpush1.msra.mxu0 0.0
    %1204 = vmatprep.subr.mxu0 0.0
    %1205 = vmatpush1.msra.mxu0 0.0
    %1206 = vmatprep.subr.mxu0 0.0
    %1207 = vmatpush1.msra.mxu0 0.0
    %1208 = vmatprep.subr.mxu0 0.0
    %1209 = vmatpush1.msra.mxu0 0.0
    %1210 = vmatprep.subr.mxu0 0.0
    %1211 = vmatpush1.msra.mxu0 0.0
    %1212 = vmatprep.subr.mxu0 0.0
    %1213 = vmatpush1.msra.mxu0 0.0
    %1214 = vmatprep.subr.mxu0 0.0
    %1215 = vmatpush1.msra.mxu0 0.0
    %1216 = vmatprep.subr.mxu0 0.0
    %1217 = vmatpush1.msra.mxu0 0.0
    %1218 = vmatprep.subr.mxu0 0.0
    %1219 = vmatpush1.msra.mxu0 0.0
    %1220 = vmatprep.subr.mxu0 0.0
    %1221 = vmatpush1.msra.mxu0 0.0
    %1222 = vmatprep.subr.mxu0 0.0
    %1223 = vmatpush1.msra.mxu0 0.0
    %1224 = vmatprep.subr.mxu0 0.0
    %1225 = vmatpush1.msra.mxu0 0.0
    %1226 = vmatprep.subr.mxu0 0.0
    %1227 = vmatpush1.msra.mxu0 0.0
    %1228 = vmatprep.subr.mxu0 0.0
    %1229 = vmatpush1.msra.mxu0 0.0
    %1230 = vmatprep.subr.mxu0 0.0
    %1231 = vmatpush1.msra.mxu0 0.0
    %1232 = vmatprep.subr.mxu0 0.0
    %1233 = vmatpush1.msra.mxu0 0.0
    %1234 = vmatprep.subr.mxu0 0.0
    %1235 = vmatpush1.msra.mxu0 0.0
    %1236 = vmatprep.subr.mxu0 0.0
    %1237 = vmatpush1.msra.mxu0 0.0
    %1238 = vmatprep.subr.mxu0 0.0
    %1239 = vmatpush1.msra.mxu0 0.0
    %1240 = vmatprep.subr.mxu0 0.0
    %1241 = vmatpush1.msra.mxu0 0.0
    %1242 = vmatprep.subr.mxu0 0.0
    %1243 = vmatpush1.msra.mxu0 0.0
    %1244 = vmatprep.subr.mxu0 0.0
    %1245 = vmatpush1.msra.mxu0 0.0
    %1246 = vmatprep.subr.mxu0 0.0
    %1247 = vmatpush1.msra.mxu0 0.0
    %1248 = vmatprep.subr.mxu0 0.0
    %1249 = vmatpush1.msra.mxu0 0.0
    %1250 = vmatprep.subr.mxu0 0.0
    %1251 = vmatpush1.msra.mxu0 0.0
    %1252 = vmatprep.subr.mxu0 0.0
    %1253 = vmatpush1.msra.mxu0 0.0
    %1254 = vmatprep.subr.mxu0 0.0
    %1255 = vmatpush1.msra.mxu0 0.0
    %1256 = vmatprep.mubr.f32.mxu0 0.0
    %1257 = vmatmul.mubr.f32.gmra.mrb[0].mxu0 %v1190
    %v1258 = vpop.f32.mrb[0].mxu0
    %v1259 = vadd.f32 %v1187, %v1258
    %v1260 = vpop.f32.mrb[0].mxu0
    %1261 = vdwg.mxu0
    %v1262 = vadd.f32 %v1168, %v1259
    %v1263 = vxor.u32 %v1262, 2147483648
    %v1264 = vmul.f32 %v1263, 1.442695
    %v1265 = vpow.pop %v1264
    %v1266 = vadd.f32 %v1265, 1.0
    %v1267 = vrcp.pop %v1266
    %v1268 = vmul.f32 1.0, %v1267
    %1270 = vrot.lane.b32.xlu0 %v1259, 64
    %v1271 = vpop.permute.xlu0 %1270
    %v1273 = vmul.f32 %v1268, %v1271
    %1275 = vrot.lane.b32.xlu0 %v1273, 64
    %v1276 = vpop.permute.xlu0 %1275
    %v1278 = vadd.f32 %v1168, %v1276
    %v1279 = vtanh.pop %v1278
    %v1280 = vsub.f32 1.0, %v1268
    %1282 = vrot.lane.b32.xlu0 %v1279, 96
    %v1283 = vpop.permute.xlu0 %1282
    %v1285 = vmul.f32 %v1280, %v1283
    %1286 = vrot.lane.b32.xlu0 %v1182, 32
    %v1287 = vpop.permute.xlu0 %1286
    %v1289 = vmul.f32 %v1268, %v1287
    %v1290 = vadd.f32 %v1285, %v1289
    %1292 = vrot.lane.b32.xlu0 %v1290, 96
    %v1293 = vpop.permute.xlu0 %1292
    %1295 = vst.msk [vmem:[#allocation3] sm:$0x3] %vm316, %v1293
    %v1296 = vsel %vm209, %v1293, 0
    %1298 = vmatprep.subr.mxu0 0.0
    %1299 = vmatpush1.msra.mxu0 %v1176
    %1300 = vmatprep.subr.mxu0 0.0
    %1301 = vmatpush1.msra.mxu0 %v1177
    %1302 = vmatprep.subr.mxu0 0.0
    %1303 = vmatpush1.msra.mxu0 %v1178
    %1304 = vmatprep.subr.mxu0 0.0
    %1305 = vmatpush1.msra.mxu0 %v1179
    %1306 = vmatprep.subr.mxu0 0.0
    %1307 = vmatpush1.msra.mxu0 0.0
    %1308 = vmatprep.subr.mxu0 0.0
    %1309 = vmatpush1.msra.mxu0 0.0
    %1310 = vmatprep.subr.mxu0 0.0
    %1311 = vmatpush1.msra.mxu0 0.0
    %1312 = vmatprep.subr.mxu0 0.0
    %1313 = vmatpush1.msra.mxu0 0.0
    %1314 = vmatprep.subr.mxu0 0.0
    %1315 = vmatpush1.msra.mxu0 0.0
    %1316 = vmatprep.subr.mxu0 0.0
    %1317 = vmatpush1.msra.mxu0 0.0
    %1318 = vmatprep.subr.mxu0 0.0
    %1319 = vmatpush1.msra.mxu0 0.0
    %1320 = vmatprep.subr.mxu0 0.0
    %1321 = vmatpush1.msra.mxu0 0.0
    %1322 = vmatprep.subr.mxu0 0.0
    %1323 = vmatpush1.msra.mxu0 0.0
    %1324 = vmatprep.subr.mxu0 0.0
    %1325 = vmatpush1.msra.mxu0 0.0
    %1326 = vmatprep.subr.mxu0 0.0
    %1327 = vmatpush1.msra.mxu0 0.0
    %1328 = vmatprep.subr.mxu0 0.0
    %1329 = vmatpush1.msra.mxu0 0.0
    %1330 = vmatprep.subr.mxu0 0.0
    %1331 = vmatpush1.msra.mxu0 0.0
    %1332 = vmatprep.subr.mxu0 0.0
    %1333 = vmatpush1.msra.mxu0 0.0
    %1334 = vmatprep.subr.mxu0 0.0
    %1335 = vmatpush1.msra.mxu0 0.0
    %1336 = vmatprep.subr.mxu0 0.0
    %1337 = vmatpush1.msra.mxu0 0.0
    %1338 = vmatprep.subr.mxu0 0.0
    %1339 = vmatpush1.msra.mxu0 0.0
    %1340 = vmatprep.subr.mxu0 0.0
    %1341 = vmatpush1.msra.mxu0 0.0
    %1342 = vmatprep.subr.mxu0 0.0
    %1343 = vmatpush1.msra.mxu0 0.0
    %1344 = vmatprep.subr.mxu0 0.0
    %1345 = vmatpush1.msra.mxu0 0.0
    %1346 = vmatprep.subr.mxu0 0.0
    %1347 = vmatpush1.msra.mxu0 0.0
    %1348 = vmatprep.subr.mxu0 0.0
    %1349 = vmatpush1.msra.mxu0 0.0
    %1350 = vmatprep.subr.mxu0 0.0
    %1351 = vmatpush1.msra.mxu0 0.0
    %1352 = vmatprep.subr.mxu0 0.0
    %1353 = vmatpush1.msra.mxu0 0.0
    %1354 = vmatprep.subr.mxu0 0.0
    %1355 = vmatpush1.msra.mxu0 0.0
    %1356 = vmatprep.subr.mxu0 0.0
    %1357 = vmatpush1.msra.mxu0 0.0
    %1358 = vmatprep.subr.mxu0 0.0
    %1359 = vmatpush1.msra.mxu0 0.0
    %1360 = vmatprep.subr.mxu0 0.0
    %1361 = vmatpush1.msra.mxu0 0.0
    %1362 = vmatprep.mubr.f32.mxu0 0.0
    %1363 = vmatmul.mubr.f32.gmra.mrb[0].mxu0 %v1296
    %v1364 = vpop.f32.mrb[0].mxu0
    %v1365 = vadd.f32 %v1187, %v1364
    %v1366 = vpop.f32.mrb[0].mxu0
    %1367 = vdwg.mxu0
    %v1369 = vrot.slane %v1365, 6
    %v1371 = vadd.f32 %v1168, %v1369
    %v1372 = vxor.u32 %v1371, 2147483648
    %v1373 = vmul.f32 %v1372, 1.442695
    %v1374 = vpow.pop %v1373
    %v1375 = vadd.f32 %v1374, 1.0
    %v1376 = vrcp.pop %v1375
    %v1377 = vmul.f32 1.0, %v1376
    %1378 = vrot.lane.b32.xlu0 %v1369, 64
    %v1379 = vpop.permute.xlu0 %1378
    %v1381 = vmul.f32 %v1377, %v1379
    %1383 = vrot.lane.b32.xlu0 %v1381, 64
    %v1384 = vpop.permute.xlu0 %1383
    %v1386 = vadd.f32 %v1168, %v1384
    %v1387 = vtanh.pop %v1386
    %v1388 = vsub.f32 1.0, %v1377
    %1390 = vrot.lane.b32.xlu0 %v1387, 96
    %v1391 = vpop.permute.xlu0 %1390
    %v1393 = vmul.f32 %v1388, %v1391
    %v1394 = vrot.slane %v1290, 6
    %v1396 = vmul.f32 %v1377, %v1394
    %v1397 = vadd.f32 %v1393, %v1396
    %1399 = vrot.lane.b32.xlu0 %v1397, 96
    %v1400 = vpop.permute.xlu0 %1399
    %1402 = vst.msk [vmem:[#allocation3] sm:$0xc] %vm424, %v1400
    %v1403 = vrot.slane %v1397, 2
    %1404 = vrot.lane.b32.xlu0 %v1403, 96
    %v1405 = vpop.permute.xlu0 %1404
    %v1406 = vsel %vm209, %v1405, 0
    %1408 = vmatprep.subr.mxu0 0.0
    %1409 = vmatpush1.msra.mxu0 %v1176
    %1410 = vmatprep.subr.mxu0 0.0
    %1411 = vmatpush1.msra.mxu0 %v1177
    %1412 = vmatprep.subr.mxu0 0.0
    %1413 = vmatpush1.msra.mxu0 %v1178
    %1414 = vmatprep.subr.mxu0 0.0
    %1415 = vmatpush1.msra.mxu0 %v1179
    %1416 = vmatprep.subr.mxu0 0.0
    %1417 = vmatpush1.msra.mxu0 0.0
    %1418 = vmatprep.subr.mxu0 0.0
    %1419 = vmatpush1.msra.mxu0 0.0
    %1420 = vmatprep.subr.mxu0 0.0
    %1421 = vmatpush1.msra.mxu0 0.0
    %1422 = vmatprep.subr.mxu0 0.0
    %1423 = vmatpush1.msra.mxu0 0.0
    %1424 = vmatprep.subr.mxu0 0.0
    %1425 = vmatpush1.msra.mxu0 0.0
    %1426 = vmatprep.subr.mxu0 0.0
    %1427 = vmatpush1.msra.mxu0 0.0
    %1428 = vmatprep.subr.mxu0 0.0
    %1429 = vmatpush1.msra.mxu0 0.0
    %1430 = vmatprep.subr.mxu0 0.0
    %1431 = vmatpush1.msra.mxu0 0.0
    %1432 = vmatprep.subr.mxu0 0.0
    %1433 = vmatpush1.msra.mxu0 0.0
    %1434 = vmatprep.subr.mxu0 0.0
    %1435 = vmatpush1.msra.mxu0 0.0
    %1436 = vmatprep.subr.mxu0 0.0
    %1437 = vmatpush1.msra.mxu0 0.0
    %1438 = vmatprep.subr.mxu0 0.0
    %1439 = vmatpush1.msra.mxu0 0.0
    %1440 = vmatprep.subr.mxu0 0.0
    %1441 = vmatpush1.msra.mxu0 0.0
    %1442 = vmatprep.subr.mxu0 0.0
    %1443 = vmatpush1.msra.mxu0 0.0
    %1444 = vmatprep.subr.mxu0 0.0
    %1445 = vmatpush1.msra.mxu0 0.0
    %1446 = vmatprep.subr.mxu0 0.0
    %1447 = vmatpush1.msra.mxu0 0.0
    %1448 = vmatprep.subr.mxu0 0.0
    %1449 = vmatpush1.msra.mxu0 0.0
    %1450 = vmatprep.subr.mxu0 0.0
    %1451 = vmatpush1.msra.mxu0 0.0
    %1452 = vmatprep.subr.mxu0 0.0
    %1453 = vmatpush1.msra.mxu0 0.0
    %1454 = vmatprep.subr.mxu0 0.0
    %1455 = vmatpush1.msra.mxu0 0.0
    %1456 = vmatprep.subr.mxu0 0.0
    %1457 = vmatpush1.msra.mxu0 0.0
    %1458 = vmatprep.subr.mxu0 0.0
    %1459 = vmatpush1.msra.mxu0 0.0
    %1460 = vmatprep.subr.mxu0 0.0
    %1461 = vmatpush1.msra.mxu0 0.0
    %1462 = vmatprep.subr.mxu0 0.0
    %1463 = vmatpush1.msra.mxu0 0.0
    %1464 = vmatprep.subr.mxu0 0.0
    %1465 = vmatpush1.msra.mxu0 0.0
    %1466 = vmatprep.subr.mxu0 0.0
    %1467 = vmatpush1.msra.mxu0 0.0
    %1468 = vmatprep.subr.mxu0 0.0
    %1469 = vmatpush1.msra.mxu0 0.0
    %1470 = vmatprep.subr.mxu0 0.0
    %1471 = vmatpush1.msra.mxu0 0.0
    %1472 = vmatprep.mubr.f32.mxu0 0.0
    %1473 = vmatmul.mubr.f32.gmra.mrb[0].mxu0 %v1406
    %v1474 = vpop.f32.mrb[0].mxu0
    %v1475 = vadd.f32 %v1187, %v1474
    %v1476 = vpop.f32.mrb[0].mxu0
    %1477 = vdwg.mxu0
    %v1479 = vrot.slane %v1475, 4
    %v1481 = vadd.f32 %v1168, %v1479
    %v1482 = vxor.u32 %v1481, 2147483648
    %v1483 = vmul.f32 %v1482, 1.442695
    %v1484 = vpow.pop %v1483
    %v1485 = vadd.f32 %v1484, 1.0
    %v1486 = vrcp.pop %v1485
    %v1487 = vmul.f32 1.0, %v1486
    %1488 = vrot.lane.b32.xlu0 %v1479, 64
    %v1489 = vpop.permute.xlu0 %1488
    %v1491 = vmul.f32 %v1487, %v1489
    %1493 = vrot.lane.b32.xlu0 %v1491, 64
    %v1494 = vpop.permute.xlu0 %1493
    %v1496 = vadd.f32 %v1168, %v1494
    %v1497 = vtanh.pop %v1496
    %v1498 = vsub.f32 1.0, %v1487
    %1500 = vrot.lane.b32.xlu0 %v1497, 96
    %v1501 = vpop.permute.xlu0 %1500
    %v1503 = vmul.f32 %v1498, %v1501
    %v1504 = vrot.slane %v1397, 6
    %v1506 = vmul.f32 %v1487, %v1504
    %v1507 = vadd.f32 %v1503, %v1506
    %1509 = vrot.lane.b32.xlu0 %v1507, 96
    %v1510 = vpop.permute.xlu0 %1509
    %1512 = vst.msk [vmem:[#allocation3] sm:$0x30] %vm535, %v1510
    %v1513 = vrot.slane %v1507, 4
    %1514 = vrot.lane.b32.xlu0 %v1513, 96
    %v1515 = vpop.permute.xlu0 %1514
    %v1516 = vsel %vm209, %v1515, 0
    %1518 = vmatprep.subr.mxu0 0.0
    %1519 = vmatpush1.msra.mxu0 %v1176
    %1520 = vmatprep.subr.mxu0 0.0
    %1521 = vmatpush1.msra.mxu0 %v1177
    %1522 = vmatprep.subr.mxu0 0.0
    %1523 = vmatpush1.msra.mxu0 %v1178
    %1524 = vmatprep.subr.mxu0 0.0
    %1525 = vmatpush1.msra.mxu0 %v1179
    %1526 = vmatprep.subr.mxu0 0.0
    %1527 = vmatpush1.msra.mxu0 0.0
    %1528 = vmatprep.subr.mxu0 0.0
    %1529 = vmatpush1.msra.mxu0 0.0
    %1530 = vmatprep.subr.mxu0 0.0
    %1531 = vmatpush1.msra.mxu0 0.0
    %1532 = vmatprep.subr.mxu0 0.0
    %1533 = vmatpush1.msra.mxu0 0.0
    %1534 = vmatprep.subr.mxu0 0.0
    %1535 = vmatpush1.msra.mxu0 0.0
    %1536 = vmatprep.subr.mxu0 0.0
    %1537 = vmatpush1.msra.mxu0 0.0
    %1538 = vmatprep.subr.mxu0 0.0
    %1539 = vmatpush1.msra.mxu0 0.0
    %1540 = vmatprep.subr.mxu0 0.0
    %1541 = vmatpush1.msra.mxu0 0.0
    %1542 = vmatprep.subr.mxu0 0.0
    %1543 = vmatpush1.msra.mxu0 0.0
    %1544 = vmatprep.subr.mxu0 0.0
    %1545 = vmatpush1.msra.mxu0 0.0
    %1546 = vmatprep.subr.mxu0 0.0
    %1547 = vmatpush1.msra.mxu0 0.0
    %1548 = vmatprep.subr.mxu0 0.0
    %1549 = vmatpush1.msra.mxu0 0.0
    %1550 = vmatprep.subr.mxu0 0.0
    %1551 = vmatpush1.msra.mxu0 0.0
    %1552 = vmatprep.subr.mxu0 0.0
    %1553 = vmatpush1.msra.mxu0 0.0
    %1554 = vmatprep.subr.mxu0 0.0
    %1555 = vmatpush1.msra.mxu0 0.0
    %1556 = vmatprep.subr.mxu0 0.0
    %1557 = vmatpush1.msra.mxu0 0.0
    %1558 = vmatprep.subr.mxu0 0.0
    %1559 = vmatpush1.msra.mxu0 0.0
    %1560 = vmatprep.subr.mxu0 0.0
    %1561 = vmatpush1.msra.mxu0 0.0
    %1562 = vmatprep.subr.mxu0 0.0
    %1563 = vmatpush1.msra.mxu0 0.0
    %1564 = vmatprep.subr.mxu0 0.0
    %1565 = vmatpush1.msra.mxu0 0.0
    %1566 = vmatprep.subr.mxu0 0.0
    %1567 = vmatpush1.msra.mxu0 0.0
    %1568 = vmatprep.subr.mxu0 0.0
    %1569 = vmatpush1.msra.mxu0 0.0
    %1570 = vmatprep.subr.mxu0 0.0
    %1571 = vmatpush1.msra.mxu0 0.0
    %1572 = vmatprep.subr.mxu0 0.0
    %1573 = vmatpush1.msra.mxu0 0.0
    %1574 = vmatprep.subr.mxu0 0.0
    %1575 = vmatpush1.msra.mxu0 0.0
    %1576 = vmatprep.subr.mxu0 0.0
    %1577 = vmatpush1.msra.mxu0 0.0
    %1578 = vmatprep.subr.mxu0 0.0
    %1579 = vmatpush1.msra.mxu0 0.0
    %1580 = vmatprep.subr.mxu0 0.0
    %1581 = vmatpush1.msra.mxu0 0.0
    %1582 = vmatprep.mubr.f32.mxu0 0.0
    %1583 = vmatmul.mubr.f32.gmra.mrb[0].mxu0 %v1516
    %v1584 = vpop.f32.mrb[0].mxu0
    %v1585 = vadd.f32 %v1187, %v1584
    %v1586 = vpop.f32.mrb[0].mxu0
    %1587 = vdwg.mxu0
    %v1589 = vrot.slane %v1585, 2
    %v1591 = vadd.f32 %v1168, %v1589
    %v1592 = vxor.u32 %v1591, 2147483648
    %v1593 = vmul.f32 %v1592, 1.442695
    %v1594 = vpow.pop %v1593
    %v1595 = vadd.f32 %v1594, 1.0
    %v1596 = vrcp.pop %v1595
    %v1597 = vmul.f32 1.0, %v1596
    %1598 = vrot.lane.b32.xlu0 %v1589, 64
    %v1599 = vpop.permute.xlu0 %1598
    %v1601 = vmul.f32 %v1597, %v1599
    %1603 = vrot.lane.b32.xlu0 %v1601, 64
    %v1604 = vpop.permute.xlu0 %1603
    %v1606 = vadd.f32 %v1168, %v1604
    %v1607 = vtanh.pop %v1606
    %v1608 = vsub.f32 1.0, %v1597
    %1610 = vrot.lane.b32.xlu0 %v1607, 96
    %v1611 = vpop.permute.xlu0 %1610
    %v1613 = vmul.f32 %v1608, %v1611
    %v1614 = vrot.slane %v1507, 6
    %v1616 = vmul.f32 %v1597, %v1614
    %v1617 = vadd.f32 %v1613, %v1616
    %1619 = vrot.lane.b32.xlu0 %v1617, 96
    %v1620 = vpop.permute.xlu0 %1619
    %1622 = vst.msk [vmem:[#allocation3] sm:$0xc0] %vm646, %v1620
    %v1623 = vrot.slane %v1617, 6
    %1624 = vrot.lane.b32.xlu0 %v1623, 96
    %v1625 = vpop.permute.xlu0 %1624
    %v1626 = vsel %vm209, %v1625, 0
    %1628 = vmatprep.subr.mxu0 0.0
    %1629 = vmatpush1.msra.mxu0 %v1176
    %1630 = vmatprep.subr.mxu0 0.0
    %1631 = vmatpush1.msra.mxu0 %v1177
    %1632 = vmatprep.subr.mxu0 0.0
    %1633 = vmatpush1.msra.mxu0 %v1178
    %1634 = vmatprep.subr.mxu0 0.0
    %1635 = vmatpush1.msra.mxu0 %v1179
    %1636 = vmatprep.subr.mxu0 0.0
    %1637 = vmatpush1.msra.mxu0 0.0
    %1638 = vmatprep.subr.mxu0 0.0
    %1639 = vmatpush1.msra.mxu0 0.0
    %1640 = vmatprep.subr.mxu0 0.0
    %1641 = vmatpush1.msra.mxu0 0.0
    %1642 = vmatprep.subr.mxu0 0.0
    %1643 = vmatpush1.msra.mxu0 0.0
    %1644 = vmatprep.subr.mxu0 0.0
    %1645 = vmatpush1.msra.mxu0 0.0
    %1646 = vmatprep.subr.mxu0 0.0
    %1647 = vmatpush1.msra.mxu0 0.0
    %1648 = vmatprep.subr.mxu0 0.0
    %1649 = vmatpush1.msra.mxu0 0.0
    %1650 = vmatprep.subr.mxu0 0.0
    %1651 = vmatpush1.msra.mxu0 0.0
    %1652 = vmatprep.subr.mxu0 0.0
    %1653 = vmatpush1.msra.mxu0 0.0
    %1654 = vmatprep.subr.mxu0 0.0
    %1655 = vmatpush1.msra.mxu0 0.0
    %1656 = vmatprep.subr.mxu0 0.0
    %1657 = vmatpush1.msra.mxu0 0.0
    %1658 = vmatprep.subr.mxu0 0.0
    %1659 = vmatpush1.msra.mxu0 0.0
    %1660 = vmatprep.subr.mxu0 0.0
    %1661 = vmatpush1.msra.mxu0 0.0
    %1662 = vmatprep.subr.mxu0 0.0
    %1663 = vmatpush1.msra.mxu0 0.0
    %1664 = vmatprep.subr.mxu0 0.0
    %1665 = vmatpush1.msra.mxu0 0.0
    %1666 = vmatprep.subr.mxu0 0.0
    %1667 = vmatpush1.msra.mxu0 0.0
    %1668 = vmatprep.subr.mxu0 0.0
    %1669 = vmatpush1.msra.mxu0 0.0
    %1670 = vmatprep.subr.mxu0 0.0
    %1671 = vmatpush1.msra.mxu0 0.0
    %1672 = vmatprep.subr.mxu0 0.0
    %1673 = vmatpush1.msra.mxu0 0.0
    %1674 = vmatprep.subr.mxu0 0.0
    %1675 = vmatpush1.msra.mxu0 0.0
    %1676 = vmatprep.subr.mxu0 0.0
    %1677 = vmatpush1.msra.mxu0 0.0
    %1678 = vmatprep.subr.mxu0 0.0
    %1679 = vmatpush1.msra.mxu0 0.0
    %1680 = vmatprep.subr.mxu0 0.0
    %1681 = vmatpush1.msra.mxu0 0.0
    %1682 = vmatprep.subr.mxu0 0.0
    %1683 = vmatpush1.msra.mxu0 0.0
    %1684 = vmatprep.subr.mxu0 0.0
    %1685 = vmatpush1.msra.mxu0 0.0
    %1686 = vmatprep.subr.mxu0 0.0
    %1687 = vmatpush1.msra.mxu0 0.0
    %1688 = vmatprep.subr.mxu0 0.0
    %1689 = vmatpush1.msra.mxu0 0.0
    %1690 = vmatprep.subr.mxu0 0.0
    %1691 = vmatpush1.msra.mxu0 0.0
    %1692 = vmatprep.mubr.f32.mxu0 0.0
    %1693 = vmatmul.mubr.f32.gmra.mrb[0].mxu0 %v1626
    %v1694 = vpop.f32.mrb[0].mxu0
    %v1695 = vadd.f32 %v1187, %v1694
    %v1696 = vpop.f32.mrb[0].mxu0
    %1697 = vdwg.mxu0
    %v1698 = vadd.f32 %v1173, %v1695
    %v1699 = vxor.u32 %v1698, 2147483648
    %v1700 = vmul.f32 %v1699, 1.442695
    %v1701 = vpow.pop %v1700
    %v1702 = vadd.f32 %v1701, 1.0
    %v1703 = vrcp.pop %v1702
    %v1704 = vmul.f32 1.0, %v1703
    %1706 = vrot.lane.b32.xlu0 %v1695, 64
    %v1707 = vpop.permute.xlu0 %1706
    %v1709 = vmul.f32 %v1704, %v1707
    %1711 = vrot.lane.b32.xlu0 %v1709, 64
    %v1712 = vpop.permute.xlu0 %1711
    %v1714 = vadd.f32 %v1173, %v1712
    %v1715 = vtanh.pop %v1714
    %v1716 = vsub.f32 1.0, %v1704
    %1718 = vrot.lane.b32.xlu0 %v1715, 96
    %v1719 = vpop.permute.xlu0 %1718
    %v1721 = vmul.f32 %v1716, %v1719
    %v1723 = vmul.f32 %v1704, %v1623
    %v1724 = vadd.f32 %v1721, %v1723
    %1726 = vrot.lane.b32.xlu0 %v1724, 96
    %v1727 = vpop.permute.xlu0 %1726
    %1729 = vst.msk [vmem:[#allocation3 + $0x8] sm:$0x3] %vm316, %v1727
    %v1730 = vsel %vm209, %v1727, 0
    %1732 = vmatprep.subr.mxu0 0.0
    %1733 = vmatpush1.msra.mxu0 %v1176
    %1734 = vmatprep.subr.mxu0 0.0
    %1735 = vmatpush1.msra.mxu0 %v1177
    %1736 = vmatprep.subr.mxu0 0.0
    %1737 = vmatpush1.msra.mxu0 %v1178
    %1738 = vmatprep.subr.mxu0 0.0
    %1739 = vmatpush1.msra.mxu0 %v1179
    %1740 = vmatprep.subr.mxu0 0.0
    %1741 = vmatpush1.msra.mxu0 0.0
    %1742 = vmatprep.subr.mxu0 0.0
    %1743 = vmatpush1.msra.mxu0 0.0
    %1744 = vmatprep.subr.mxu0 0.0
    %1745 = vmatpush1.msra.mxu0 0.0
    %1746 = vmatprep.subr.mxu0 0.0
    %1747 = vmatpush1.msra.mxu0 0.0
    %1748 = vmatprep.subr.mxu0 0.0
    %1749 = vmatpush1.msra.mxu0 0.0
    %1750 = vmatprep.subr.mxu0 0.0
    %1751 = vmatpush1.msra.mxu0 0.0
    %1752 = vmatprep.subr.mxu0 0.0
    %1753 = vmatpush1.msra.mxu0 0.0
    %1754 = vmatprep.subr.mxu0 0.0
    %1755 = vmatpush1.msra.mxu0 0.0
    %1756 = vmatprep.subr.mxu0 0.0
    %1757 = vmatpush1.msra.mxu0 0.0
    %1758 = vmatprep.subr.mxu0 0.0
    %1759 = vmatpush1.msra.mxu0 0.0
    %1760 = vmatprep.subr.mxu0 0.0
    %1761 = vmatpush1.msra.mxu0 0.0
    %1762 = vmatprep.subr.mxu0 0.0
    %1763 = vmatpush1.msra.mxu0 0.0
    %1764 = vmatprep.subr.mxu0 0.0
    %1765 = vmatpush1.msra.mxu0 0.0
    %1766 = vmatprep.subr.mxu0 0.0
    %1767 = vmatpush1.msra.mxu0 0.0
    %1768 = vmatprep.subr.mxu0 0.0
    %1769 = vmatpush1.msra.mxu0 0.0
    %1770 = vmatprep.subr.mxu0 0.0
    %1771 = vmatpush1.msra.mxu0 0.0
    %1772 = vmatprep.subr.mxu0 0.0
    %1773 = vmatpush1.msra.mxu0 0.0
    %1774 = vmatprep.subr.mxu0 0.0
    %1775 = vmatpush1.msra.mxu0 0.0
    %1776 = vmatprep.subr.mxu0 0.0
    %1777 = vmatpush1.msra.mxu0 0.0
    %1778 = vmatprep.subr.mxu0 0.0
    %1779 = vmatpush1.msra.mxu0 0.0
    %1780 = vmatprep.subr.mxu0 0.0
    %1781 = vmatpush1.msra.mxu0 0.0
    %1782 = vmatprep.subr.mxu0 0.0
    %1783 = vmatpush1.msra.mxu0 0.0
    %1784 = vmatprep.subr.mxu0 0.0
    %1785 = vmatpush1.msra.mxu0 0.0
    %1786 = vmatprep.subr.mxu0 0.0
    %1787 = vmatpush1.msra.mxu0 0.0
    %1788 = vmatprep.subr.mxu0 0.0
    %1789 = vmatpush1.msra.mxu0 0.0
    %1790 = vmatprep.subr.mxu0 0.0
    %1791 = vmatpush1.msra.mxu0 0.0
    %1792 = vmatprep.subr.mxu0 0.0
    %1793 = vmatpush1.msra.mxu0 0.0
    %1794 = vmatprep.subr.mxu0 0.0
    %1795 = vmatpush1.msra.mxu0 0.0
    %1796 = vmatprep.mubr.f32.mxu0 0.0
    %1797 = vmatmul.mubr.f32.gmra.mrb[0].mxu0 %v1730
    %v1798 = vpop.f32.mrb[0].mxu0
    %v1799 = vadd.f32 %v1187, %v1798
    %v1800 = vpop.f32.mrb[0].mxu0
    %1801 = vdwg.mxu0
    %v1803 = vrot.slane %v1799, 6
    %v1805 = vadd.f32 %v1173, %v1803
    %v1806 = vxor.u32 %v1805, 2147483648
    %v1807 = vmul.f32 %v1806, 1.442695
    %v1808 = vpow.pop %v1807
    %v1809 = vadd.f32 %v1808, 1.0
    %v1810 = vrcp.pop %v1809
    %v1811 = vmul.f32 1.0, %v1810
    %1812 = vrot.lane.b32.xlu0 %v1803, 64
    %v1813 = vpop.permute.xlu0 %1812
    %v1815 = vmul.f32 %v1811, %v1813
    %1817 = vrot.lane.b32.xlu0 %v1815, 64
    %v1818 = vpop.permute.xlu0 %1817
    %v1820 = vadd.f32 %v1173, %v1818
    %v1821 = vtanh.pop %v1820
    %v1822 = vsub.f32 1.0, %v1811
    %1824 = vrot.lane.b32.xlu0 %v1821, 96
    %v1825 = vpop.permute.xlu0 %1824
    %v1827 = vmul.f32 %v1822, %v1825
    %v1828 = vrot.slane %v1724, 6
    %v1830 = vmul.f32 %v1811, %v1828
    %v1831 = vadd.f32 %v1827, %v1830
    %1833 = vrot.lane.b32.xlu0 %v1831, 96
    %v1834 = vpop.permute.xlu0 %1833
    %1836 = vst.msk [vmem:[#allocation3 + $0x8] sm:$0xc] %vm424, %v1834
    %v1837 = vrot.slane %v1831, 2
    %1838 = vrot.lane.b32.xlu0 %v1837, 96
    %v1839 = vpop.permute.xlu0 %1838
    %v1840 = vsel %vm209, %v1839, 0
    %1842 = vmatprep.subr.mxu0 0.0
    %1843 = vmatpush1.msra.mxu0 %v1176
    %1844 = vmatprep.subr.mxu0 0.0
    %1845 = vmatpush1.msra.mxu0 %v1177
    %1846 = vmatprep.subr.mxu0 0.0
    %1847 = vmatpush1.msra.mxu0 %v1178
    %1848 = vmatprep.subr.mxu0 0.0
    %1849 = vmatpush1.msra.mxu0 %v1179
    %1850 = vmatprep.subr.mxu0 0.0
    %1851 = vmatpush1.msra.mxu0 0.0
    %1852 = vmatprep.subr.mxu0 0.0
    %1853 = vmatpush1.msra.mxu0 0.0
    %1854 = vmatprep.subr.mxu0 0.0
    %1855 = vmatpush1.msra.mxu0 0.0
    %1856 = vmatprep.subr.mxu0 0.0
    %1857 = vmatpush1.msra.mxu0 0.0
    %1858 = vmatprep.subr.mxu0 0.0
    %1859 = vmatpush1.msra.mxu0 0.0
    %1860 = vmatprep.subr.mxu0 0.0
    %1861 = vmatpush1.msra.mxu0 0.0
    %1862 = vmatprep.subr.mxu0 0.0
    %1863 = vmatpush1.msra.mxu0 0.0
    %1864 = vmatprep.subr.mxu0 0.0
    %1865 = vmatpush1.msra.mxu0 0.0
    %1866 = vmatprep.subr.mxu0 0.0
    %1867 = vmatpush1.msra.mxu0 0.0
    %1868 = vmatprep.subr.mxu0 0.0
    %1869 = vmatpush1.msra.mxu0 0.0
    %1870 = vmatprep.subr.mxu0 0.0
    %1871 = vmatpush1.msra.mxu0 0.0
    %1872 = vmatprep.subr.mxu0 0.0
    %1873 = vmatpush1.msra.mxu0 0.0
    %1874 = vmatprep.subr.mxu0 0.0
    %1875 = vmatpush1.msra.mxu0 0.0
    %1876 = vmatprep.subr.mxu0 0.0
    %1877 = vmatpush1.msra.mxu0 0.0
    %1878 = vmatprep.subr.mxu0 0.0
    %1879 = vmatpush1.msra.mxu0 0.0
    %1880 = vmatprep.subr.mxu0 0.0
    %1881 = vmatpush1.msra.mxu0 0.0
    %1882 = vmatprep.subr.mxu0 0.0
    %1883 = vmatpush1.msra.mxu0 0.0
    %1884 = vmatprep.subr.mxu0 0.0
    %1885 = vmatpush1.msra.mxu0 0.0
    %1886 = vmatprep.subr.mxu0 0.0
    %1887 = vmatpush1.msra.mxu0 0.0
    %1888 = vmatprep.subr.mxu0 0.0
    %1889 = vmatpush1.msra.mxu0 0.0
    %1890 = vmatprep.subr.mxu0 0.0
    %1891 = vmatpush1.msra.mxu0 0.0
    %1892 = vmatprep.subr.mxu0 0.0
    %1893 = vmatpush1.msra.mxu0 0.0
    %1894 = vmatprep.subr.mxu0 0.0
    %1895 = vmatpush1.msra.mxu0 0.0
    %1896 = vmatprep.subr.mxu0 0.0
    %1897 = vmatpush1.msra.mxu0 0.0
    %1898 = vmatprep.subr.mxu0 0.0
    %1899 = vmatpush1.msra.mxu0 0.0
    %1900 = vmatprep.subr.mxu0 0.0
    %1901 = vmatpush1.msra.mxu0 0.0
    %1902 = vmatprep.subr.mxu0 0.0
    %1903 = vmatpush1.msra.mxu0 0.0
    %1904 = vmatprep.subr.mxu0 0.0
    %1905 = vmatpush1.msra.mxu0 0.0
    %1906 = vmatprep.mubr.f32.mxu0 0.0
    %1907 = vmatmul.mubr.f32.gmra.mrb[0].mxu0 %v1840
    %v1908 = vpop.f32.mrb[0].mxu0
    %v1909 = vadd.f32 %v1187, %v1908
    %v1910 = vpop.f32.mrb[0].mxu0
    %1911 = vdwg.mxu0
    %v1913 = vrot.slane %v1909, 4
    %v1915 = vadd.f32 %v1173, %v1913
    %v1916 = vxor.u32 %v1915, 2147483648
    %v1917 = vmul.f32 %v1916, 1.442695
    %v1918 = vpow.pop %v1917
    %v1919 = vadd.f32 %v1918, 1.0
    %v1920 = vrcp.pop %v1919
    %v1921 = vmul.f32 1.0, %v1920
    %1922 = vrot.lane.b32.xlu0 %v1913, 64
    %v1923 = vpop.permute.xlu0 %1922
    %v1925 = vmul.f32 %v1921, %v1923
    %1927 = vrot.lane.b32.xlu0 %v1925, 64
    %v1928 = vpop.permute.xlu0 %1927
    %v1930 = vadd.f32 %v1173, %v1928
    %v1931 = vtanh.pop %v1930
    %v1932 = vsub.f32 1.0, %v1921
    %1934 = vrot.lane.b32.xlu0 %v1931, 96
    %v1935 = vpop.permute.xlu0 %1934
    %v1937 = vmul.f32 %v1932, %v1935
    %v1938 = vrot.slane %v1831, 6
    %v1940 = vmul.f32 %v1921, %v1938
    %v1941 = vadd.f32 %v1937, %v1940
    %1943 = vrot.lane.b32.xlu0 %v1941, 96
    %v1944 = vpop.permute.xlu0 %1943
    %1946 = vst.msk [vmem:[#allocation3 + $0x8] sm:$0x30] %vm535, %v1944
    %v1947 = vrot.slane %v1941, 4
    %1948 = vrot.lane.b32.xlu0 %v1947, 96
    %v1949 = vpop.permute.xlu0 %1948
    %v1950 = vsel %vm209, %v1949, 0
    %1952 = vmatprep.subr.mxu0 0.0
    %1953 = vmatpush1.msra.mxu0 %v1176
    %1954 = vmatprep.subr.mxu0 0.0
    %1955 = vmatpush1.msra.mxu0 %v1177
    %1956 = vmatprep.subr.mxu0 0.0
    %1957 = vmatpush1.msra.mxu0 %v1178
    %1958 = vmatprep.subr.mxu0 0.0
    %1959 = vmatpush1.msra.mxu0 %v1179
    %1960 = vmatprep.subr.mxu0 0.0
    %1961 = vmatpush1.msra.mxu0 0.0
    %1962 = vmatprep.subr.mxu0 0.0
    %1963 = vmatpush1.msra.mxu0 0.0
    %1964 = vmatprep.subr.mxu0 0.0
    %1965 = vmatpush1.msra.mxu0 0.0
    %1966 = vmatprep.subr.mxu0 0.0
    %1967 = vmatpush1.msra.mxu0 0.0
    %1968 = vmatprep.subr.mxu0 0.0
    %1969 = vmatpush1.msra.mxu0 0.0
    %1970 = vmatprep.subr.mxu0 0.0
    %1971 = vmatpush1.msra.mxu0 0.0
    %1972 = vmatprep.subr.mxu0 0.0
    %1973 = vmatpush1.msra.mxu0 0.0
    %1974 = vmatprep.subr.mxu0 0.0
    %1975 = vmatpush1.msra.mxu0 0.0
    %1976 = vmatprep.subr.mxu0 0.0
    %1977 = vmatpush1.msra.mxu0 0.0
    %1978 = vmatprep.subr.mxu0 0.0
    %1979 = vmatpush1.msra.mxu0 0.0
    %1980 = vmatprep.subr.mxu0 0.0
    %1981 = vmatpush1.msra.mxu0 0.0
    %1982 = vmatprep.subr.mxu0 0.0
    %1983 = vmatpush1.msra.mxu0 0.0
    %1984 = vmatprep.subr.mxu0 0.0
    %1985 = vmatpush1.msra.mxu0 0.0
    %1986 = vmatprep.subr.mxu0 0.0
    %1987 = vmatpush1.msra.mxu0 0.0
    %1988 = vmatprep.subr.mxu0 0.0
    %1989 = vmatpush1.msra.mxu0 0.0
    %1990 = vmatprep.subr.mxu0 0.0
    %1991 = vmatpush1.msra.mxu0 0.0
    %1992 = vmatprep.subr.mxu0 0.0
    %1993 = vmatpush1.msra.mxu0 0.0
    %1994 = vmatprep.subr.mxu0 0.0
    %1995 = vmatpush1.msra.mxu0 0.0
    %1996 = vmatprep.subr.mxu0 0.0
    %1997 = vmatpush1.msra.mxu0 0.0
    %1998 = vmatprep.subr.mxu0 0.0
    %1999 = vmatpush1.msra.mxu0 0.0
    %2000 = vmatprep.subr.mxu0 0.0
    %2001 = vmatpush1.msra.mxu0 0.0
    %2002 = vmatprep.subr.mxu0 0.0
    %2003 = vmatpush1.msra.mxu0 0.0
    %2004 = vmatprep.subr.mxu0 0.0
    %2005 = vmatpush1.msra.mxu0 0.0
    %2006 = vmatprep.subr.mxu0 0.0
    %2007 = vmatpush1.msra.mxu0 0.0
    %2008 = vmatprep.subr.mxu0 0.0
    %2009 = vmatpush1.msra.mxu0 0.0
    %2010 = vmatprep.subr.mxu0 0.0
    %2011 = vmatpush1.msra.mxu0 0.0
    %2012 = vmatprep.subr.mxu0 0.0
    %2013 = vmatpush1.msra.mxu0 0.0
    %2014 = vmatprep.subr.mxu0 0.0
    %2015 = vmatpush1.msra.mxu0 0.0
    %2016 = vmatprep.mubr.f32.mxu0 0.0
    %2017 = vmatmul.mubr.f32.gmra.mrb[0].mxu0 %v1950
    %v2018 = vpop.f32.mrb[0].mxu0
    %v2019 = vadd.f32 %v1187, %v2018
    %v2020 = vpop.f32.mrb[0].mxu0
    %2021 = vdwg.mxu0
    %v2023 = vrot.slane %v2019, 2
    %v2025 = vadd.f32 %v1173, %v2023
    %v2026 = vxor.u32 %v2025, 2147483648
    %v2027 = vmul.f32 %v2026, 1.442695
    %v2028 = vpow.pop %v2027
    %v2029 = vadd.f32 %v2028, 1.0
    %v2030 = vrcp.pop %v2029
    %v2031 = vmul.f32 1.0, %v2030
    %2032 = vrot.lane.b32.xlu0 %v2023, 64
    %v2033 = vpop.permute.xlu0 %2032
    %v2035 = vmul.f32 %v2031, %v2033
    %2037 = vrot.lane.b32.xlu0 %v2035, 64
    %v2038 = vpop.permute.xlu0 %2037
    %v2040 = vadd.f32 %v1173, %v2038
    %v2041 = vtanh.pop %v2040
    %v2042 = vsub.f32 1.0, %v2031
    %2044 = vrot.lane.b32.xlu0 %v2041, 96
    %v2045 = vpop.permute.xlu0 %2044
    %v2047 = vmul.f32 %v2042, %v2045
    %v2048 = vrot.slane %v1941, 6
    %v2050 = vmul.f32 %v2031, %v2048
    %v2051 = vadd.f32 %v2047, %v2050
    %2053 = vrot.lane.b32.xlu0 %v2051, 96
    %v2054 = vpop.permute.xlu0 %2053
    %2056 = vst.msk [vmem:[#allocation3 + $0x8] sm:$0xc0] %vm646, %v2054
    %v2057 = vld [vmem:[#allocation3] sm:$0xff]
    %v2058 = vld [vmem:[#allocation3 + $0x8] sm:$0xff]
    %v2059 = vld [vmem:[%s9] sm:$0xff]
    %v2060 = vld [vmem:[%s9 + $0x8] sm:$0xff]
    %v2061 = vld [vmem:[%s9 + $0x10] sm:$0xff]
    %v2062 = vld [vmem:[%s9 + $0x18] sm:$0xff]
    %v2063 = vld [vmem:[#allocation12] sm:$0x1]
    %v2065 = vlaneseq
    %v2066 = vshrl.u32 %v2065, 7
    %v2067 = vsub.s32 0, %v2066
    %v2068 = vrot.slane %v2063, %v2067
    %v2071 = vsel %vm209, %v2057, 0
    %v2074 = vsel %vm209, %v2058, 0
    %2076 = vmatprep.subr.mxu0 0.0
    %2077 = vmatpush1.msra.mxu0 %v2059
    %2078 = vmatprep.subr.mxu0 0.0
    %2079 = vmatpush1.msra.mxu0 %v2060
    %2080 = vmatprep.subr.mxu0 0.0
    %2081 = vmatpush1.msra.mxu0 %v2061
    %2082 = vmatprep.subr.mxu0 0.0
    %2083 = vmatpush1.msra.mxu0 %v2062
    %2084 = vmatprep.subr.mxu0 0.0
    %2085 = vmatpush1.msra.mxu0 0.0
    %2086 = vmatprep.subr.mxu0 0.0
    %2087 = vmatpush1.msra.mxu0 0.0
    %2088 = vmatprep.subr.mxu0 0.0
    %2089 = vmatpush1.msra.mxu0 0.0
    %2090 = vmatprep.subr.mxu0 0.0
    %2091 = vmatpush1.msra.mxu0 0.0
    %2092 = vmatprep.subr.mxu0 0.0
    %2093 = vmatpush1.msra.mxu0 0.0
    %2094 = vmatprep.subr.mxu0 0.0
    %2095 = vmatpush1.msra.mxu0 0.0
    %2096 = vmatprep.subr.mxu0 0.0
    %2097 = vmatpush1.msra.mxu0 0.0
    %2098 = vmatprep.subr.mxu0 0.0
    %2099 = vmatpush1.msra.mxu0 0.0
    %2100 = vmatprep.subr.mxu0 0.0
    %2101 = vmatpush1.msra.mxu0 0.0
    %2102 = vmatprep.subr.mxu0 0.0
    %2103 = vmatpush1.msra.mxu0 0.0
    %2104 = vmatprep.subr.mxu0 0.0
    %2105 = vmatpush1.msra.mxu0 0.0
    %2106 = vmatprep.subr.mxu0 0.0
    %2107 = vmatpush1.msra.mxu0 0.0
    %2108 = vmatprep.subr.mxu0 0.0
    %2109 = vmatpush1.msra.mxu0 0.0
    %2110 = vmatprep.subr.mxu0 0.0
    %2111 = vmatpush1.msra.mxu0 0.0
    %2112 = vmatprep.subr.mxu0 0.0
    %2113 = vmatpush1.msra.mxu0 0.0
    %2114 = vmatprep.subr.mxu0 0.0
    %2115 = vmatpush1.msra.mxu0 0.0
    %2116 = vmatprep.subr.mxu0 0.0
    %2117 = vmatpush1.msra.mxu0 0.0
    %2118 = vmatprep.subr.mxu0 0.0
    %2119 = vmatpush1.msra.mxu0 0.0
    %2120 = vmatprep.subr.mxu0 0.0
    %2121 = vmatpush1.msra.mxu0 0.0
    %2122 = vmatprep.subr.mxu0 0.0
    %2123 = vmatpush1.msra.mxu0 0.0
    %2124 = vmatprep.subr.mxu0 0.0
    %2125 = vmatpush1.msra.mxu0 0.0
    %2126 = vmatprep.subr.mxu0 0.0
    %2127 = vmatpush1.msra.mxu0 0.0
    %2128 = vmatprep.subr.mxu0 0.0
    %2129 = vmatpush1.msra.mxu0 0.0
    %2130 = vmatprep.subr.mxu0 0.0
    %2131 = vmatpush1.msra.mxu0 0.0
    %2132 = vmatprep.subr.mxu0 0.0
    %2133 = vmatpush1.msra.mxu0 0.0
    %2134 = vmatprep.subr.mxu0 0.0
    %2135 = vmatpush1.msra.mxu0 0.0
    %2136 = vmatprep.subr.mxu0 0.0
    %2137 = vmatpush1.msra.mxu0 0.0
    %2138 = vmatprep.subr.mxu0 0.0
    %2139 = vmatpush1.msra.mxu0 0.0
    %2140 = vmatprep.mubr.f32.mxu0 0.0
    %2141 = vmatmul.mubr.f32.gmra.mrb[0].mxu0 %v2071
    %v2142 = vpop.f32.mrb[0].mxu0
    %v2143 = vadd.f32 %v2068, %v2142
    %v2144 = vpop.f32.mrb[0].mxu0
    %2145 = vmatprep.mubr.f32.mxu0 0.0
    %2146 = vmatmul.mubr.f32.gmra.mrb[0].mxu0 %v2074
    %v2147 = vpop.f32.mrb[0].mxu0
    %v2148 = vadd.f32 %v2068, %v2147
    %v2149 = vpop.f32.mrb[0].mxu0
    %2150 = vdwg.mxu0
    %v2151 = vtanh.pop %v2143
    %v2152 = vtanh.pop %v2148
    %2153 = vst.msk [vmem:[%s12] sm:$0xff] %vm115, %v2151
    %2154 = vst.msk [vmem:[%s12 + $0x8] sm:$0xff] %vm115, %v2152
    %2155 = vst.msk [vmem:[#allocation13 - $0x6] sm:$0xc0] %vm646, %v1079
    %s2156 = scalar_lea.vmem [#allocation13], 2
    %2157 = vst.msk [vmem:[%s2156 - $0x6] sm:$0xc0] %vm646, %v2054
    // Predicated region
    $region70: #{sequence_model_forward.1} parent=1 // pred_check
      _
    $region71: #{sequence_model_forward.1} parent=1 // pred_check_branch
      %2159 = sbr.rel (0) target = $region73
    $region72: #{sequence_model_forward.1} parent=1 // pred_region
      _
    $region73: #{sequence_model_forward.1} parent=1 // pred_fallthru
      _
    // Predicated region
    $region74: #{sequence_model_forward.1} parent=1 // pred_check
      _
    $region75: #{sequence_model_forward.1} parent=1 // pred_check_branch
      %2161 = sbr.rel (0) target = $region77
    $region76: #{sequence_model_forward.1} parent=1 // pred_region
      %s2163 = ssub.s32 64, 64
      %2164 = vsyncadd [#allocation6], %s2163
      %s2165 = sshll.u32 [#allocation13], 4
      %s2166 = int_to_ptr.vmem [resolvable:$true] %s2165
      %2171 = dma.vmem_to_hbm [thread:$0]  %s2166, 64, %s13, [#allocation6], 32, 32, 2
    $region77: #{sequence_model_forward.1} parent=1 // pred_fallthru
      _
    // Predicated region
    $region78: #{sequence_model_forward.1} parent=1 // pred_check
      _
    $region79: #{sequence_model_forward.1} parent=1 // pred_check_branch
      %2173 = sbr.rel (0) target = $region81
    $region80: #{sequence_model_forward.1} parent=1 // pred_region
      _
    $region81: #{sequence_model_forward.1} parent=1 // pred_fallthru
      _
    // Predicated region
    $region82: #{sequence_model_forward.1} parent=1 // pred_check
      _
    $region83: #{sequence_model_forward.1} parent=1 // pred_check_branch
      %2175 = sbr.rel (0) target = $region85
    $region84: #{sequence_model_forward.1} parent=1 // pred_region
      %2176 = dma.done [#allocation6], 64
    $region85: #{sequence_model_forward.1} parent=1 // pred_fallthru
      _
    %2177 = vsyncpa [#allocation5], 1
    %2178 = vsyncpa [#allocation8], 1
    %2179 = vsyncpa [#allocation11], 1
    %2180 = vsyncpa [#allocation6], 1

</llo_original>
